<compile_context>
chip_gen: v7x
topology: tpu7x:2x2x1
jax: 0.10.0
libtpu: 0.0.40
codegen_flags: <defaults>
</compile_context>

<pallas_src>
import numpy as np

import jax
import jax.numpy as jnp
from jax.experimental import pallas as pl
from jax.experimental.pallas import tpu as pltpu

H = 16
W = 16
N = 2                       # demo batch
EPS = 1e-5                  # PyTorch BatchNorm2d default eps

CIN = 3
C1, K1 = 16, 5
C2, K2 = 16, 5
C3, K3 = 16, 3

H1, W1O = H - K1 + 1, W - K1 + 1          # 12, 12
H2, W2O = H1 - K2 + 1, W1O - K2 + 1       # 8, 8
H3, W3O = H2 - K3 + 1, W2O - K3 + 1       # 6, 6
FDIM = C3 * H3 * W3O                      # 576
FC1 = 16
NOUT = 2

WC0 = W * CIN            # 48   input row width (w, cin)
WC1 = W1O * C1           # 192  conv1 output row width
WC2 = W2O * C2           # 128  conv2 output row width
WC3 = W3O * C3           # 96   conv3 output row width
KK1 = K1 * WC0           # 240  merged-K of conv1
KK2 = K2 * WC1           # 960  merged-K of conv2
KK3 = K3 * WC2           # 384  merged-K of conv3


# ----------------------------------------------------------------------------
# Fused Pallas kernel (one batch tile per grid step)
# ----------------------------------------------------------------------------
def fused_forward_kernel(x_ref, w1_ref, b1_ref, w2_ref, b2_ref, w3_ref, b3_ref,
                         fw1_ref, fb1_ref, fw2_ref, fb2_ref, o_ref,
                         s1_ref, s2_ref, s3_ref, sf_ref):
    """One tile of nb images; 5 matmuls total, all activations VMEM/vreg resident.

    Layouts:
      x_ref  : (nb, H, W*CIN)        f32   rows = image rows, cols = (w, cin)
      wL_ref : (khL*Win*Cin, Wo*Co)  bf16  merged-K band matrix
      bL_ref : (1, Wo*Cout)          f32   bias tiled over output width
      fw1_ref: (576, 16) bf16, fw2_ref: (16, 2) f32
      sL_ref : bf16 im2row scratch for layer L; sf_ref: (nb, 576) flatten scratch
    """
    nb = x_ref.shape[0]
    bf16 = jnp.bfloat16

    # ---- conv1 (bn0 + bn1 folded): build im2row once, single K=240 matmul ----
    xb = x_ref[...].astype(bf16)                       # single cast of the tile
    for n in range(nb):
        for i in range(K1):
            s1_ref[n * H1:(n + 1) * H1, i * WC0:(i + 1) * WC0] = xb[n, i:i + H1, :]
    a1 = jnp.maximum(
        jnp.dot(s1_ref[...], w1_ref[...], preferred_element_type=jnp.float32)
        + b1_ref[...], 0.0).astype(bf16)               # (nb*12, 192)

    # ---- conv2 (bn2 folded) ----
    for n in range(nb):
        for i in range(K2):
            s2_ref[n * H2:(n + 1) * H2, i * WC1:(i + 1) * WC1] = \
                a1[n * H1 + i: n * H1 + i + H2, :]
    a2 = jnp.maximum(
        jnp.dot(s2_ref[...], w2_ref[...], preferred_element_type=jnp.float32)
        + b2_ref[...], 0.0).astype(bf16)               # (nb*8, 128)

    # ---- conv3 (no BN / no ReLU) ----
    for n in range(nb):
        for i in range(K3):
            s3_ref[n * H3:(n + 1) * H3, i * WC2:(i + 1) * WC2] = \
                a2[n * H2 + i: n * H2 + i + H3, :]
    a3 = (jnp.dot(s3_ref[...], w3_ref[...], preferred_element_type=jnp.float32)
          + b3_ref[...]).astype(bf16)                  # (nb*6, 96)

    # ---- FC head: flatten (h, w, c) lane-dense once, one K=576 matmul ----
    for n in range(nb):
        for h in range(H3):
            sf_ref[n:n + 1, h * WC3:(h + 1) * WC3] = a3[n * H3 + h: n * H3 + h + 1, :]
    h1 = jnp.maximum(
        jnp.dot(sf_ref[...], fw1_ref[...], preferred_element_type=jnp.float32)
        + fb1_ref[...], 0.0)                           # (nb, 16) f32

    # Final tiny layer in f32; single lane-contiguous store of the whole tile.
    o_ref[...] = jnp.dot(h1, fw2_ref[...],
                         preferred_element_type=jnp.float32) + fb2_ref[...]


def _const_index_map(ndim):
    return lambda b, _nd=ndim: (0,) * _nd


@jax.jit
def road_detector_forward(x, kp):
    """x: (N, 3, H, W) NCHW f32;  kp: prepacked kernel params."""
    n = x.shape[0]
    nb = n if n <= 8 else 8                  # images per grid step (batch tile)
    pad = (-n) % nb

    # TODO(synk): this NCHW -> (N, H, W*CIN) transpose is per-call host glue; a
    # real serving path should feed channel-last rows directly.
    x_rows = x.transpose(0, 2, 3, 1).reshape(n, H, WC0)
    if pad:
        x_rows = jnp.pad(x_rows, ((0, pad), (0, 0), (0, 0)))
    num_tiles = (n + pad) // nb

    weight_args = (kp["w1"], kp["b1"], kp["w2"], kp["b2"], kp["w3"], kp["b3"],
                   kp["fw1"], kp["fb1"], kp["fw2"], kp["fb2"])

    out = pl.pallas_call(
        fused_forward_kernel,
        out_shape=jax.ShapeDtypeStruct((n + pad, NOUT), jnp.float32),
        grid=(num_tiles,),
        in_specs=[pl.BlockSpec((nb, H, WC0), lambda b: (b, 0, 0))] +
                 [pl.BlockSpec(a.shape, _const_index_map(a.ndim))
                  for a in weight_args],
        out_specs=pl.BlockSpec((nb, NOUT), lambda b: (b, 0)),
        scratch_shapes=[
            pltpu.VMEM((nb * H1, KK1), jnp.bfloat16),   # conv1 im2row (24, 240)
            pltpu.VMEM((nb * H2, KK2), jnp.bfloat16),   # conv2 im2row (16, 960)
            pltpu.VMEM((nb * H3, KK3), jnp.bfloat16),   # conv3 im2row (12, 384)
            pltpu.VMEM((nb, FDIM), jnp.bfloat16),       # FC1 flatten   (nb, 576)
        ],
        compiler_params=pltpu.CompilerParams(
            dimension_semantics=("parallel",)),
    )(x_rows, *weight_args)
    return out[:n]


# ----------------------------------------------------------------------------
# One-time parameter folding / packing (host side, NumPy)
# ----------------------------------------------------------------------------
def bn_fold(gamma, beta, mean, var):
    scale = gamma / jnp.sqrt(var + EPS)
    shift = beta - mean * scale
    return scale.astype(jnp.float32), shift.astype(jnp.float32)


def _pack_conv_merged(w, b, w_in):
    """w: (Cout, Cin, kh, kw), b: (Cout,) -> merged-K band matrix + tiled bias.

    Wm[i*Win*Cin + x*Cin + ci, xo*Cout + co] = w[co, ci, i, x-xo] (0<=x-xo<kw) else 0.
    """
    cout, cin, kh, kw = w.shape
    wo = w_in - kw + 1
    taps = np.zeros((kh, w_in * cin, wo * cout), np.float32)
    for i in range(kh):
        for xo in range(wo):
            for j in range(kw):
                x = xo + j
                taps[i, x * cin:(x + 1) * cin, xo * cout:(xo + 1) * cout] = w[:, :, i, j].T
    merged = taps.reshape(kh * w_in * cin, wo * cout)
    bias_row = np.tile(np.asarray(b, np.float32), wo)[None, :]
    return merged, bias_row


def prepare_kernel_params(p):
    """Fold all BN affines into conv weights/biases and prepack MXU-layout weights."""
    s0 = np.asarray(p["bn0_scale"]); t0 = np.asarray(p["bn0_shift"])
    s1 = np.asarray(p["bn1_scale"]); t1 = np.asarray(p["bn1_shift"])
    s2 = np.asarray(p["bn2_scale"]); t2 = np.asarray(p["bn2_shift"])

    w1 = np.asarray(p["w1"]); b1 = np.asarray(p["b1"])
    w2 = np.asarray(p["w2"]); b2 = np.asarray(p["b2"])
    w3 = np.asarray(p["w3"]); b3 = np.asarray(p["b3"])

    # Fold input BN (bn0) and post BN (bn1) into conv1.
    b1f = b1 + np.einsum("oihw,i->o", w1, t0)
    w1f = w1 * s0[None, :, None, None]
    w1f = w1f * s1[:, None, None, None]
    b1f = b1f * s1 + t1
    # Fold bn2 into conv2.
    w2f = w2 * s2[:, None, None, None]
    b2f = b2 * s2 + t2

    w1m, brow1 = _pack_conv_merged(w1f, b1f, W)       # (240, 192), (1, 192)
    w2m, brow2 = _pack_conv_merged(w2f, b2f, W1O)     # (960, 128), (1, 128)
    w3m, brow3 = _pack_conv_merged(w3, b3, W2O)       # (384, 96),  (1, 96)

    # FC1: torch flatten order is (c, h, w); kernel flatten order is (h, w, c):
    #   fw1[h*96 + w*16 + c, o] = fc1_w[o, c*36 + h*6 + w].
    fw1 = (np.asarray(p["fc1_w"]).reshape(FC1, C3, H3, W3O)
           .transpose(2, 3, 1, 0).reshape(FDIM, FC1))
    fb1 = np.asarray(p["fc1_b"])[None, :]
    fw2 = np.asarray(p["fc2_w"]).T                    # (16, 2)
    fb2 = np.asarray(p["fc2_b"])[None, :]

    bf = jnp.bfloat16
    f32 = jnp.float32
    return {
        "w1": jnp.asarray(w1m, dtype=bf), "b1": jnp.asarray(brow1, dtype=f32),
        "w2": jnp.asarray(w2m, dtype=bf), "b2": jnp.asarray(brow2, dtype=f32),
        "w3": jnp.asarray(w3m, dtype=bf), "b3": jnp.asarray(brow3, dtype=f32),
        "fw1": jnp.asarray(fw1, dtype=bf), "fb1": jnp.asarray(fb1, dtype=f32),
        "fw2": jnp.asarray(fw2, dtype=f32), "fb2": jnp.asarray(fb2, dtype=f32),
    }


# ----------------------------------------------------------------------------
# Parameters (deterministic, synthetic; PyTorch layouts)
# ----------------------------------------------------------------------------
def init_params(key):
    keys = jax.random.split(key, 16)

    def rand(k, shape, scale=0.05):
        return (jax.random.normal(k, shape) * scale).astype(jnp.float32)

    p = {}
    # TODO(synk): BatchNorm implemented in eval mode (running stats folded to a
    # per-channel affine); training-mode batch statistics are not reproduced.
    g0 = 1.0 + rand(keys[0], (3,), 0.1)
    b0 = rand(keys[1], (3,), 0.1)
    m0 = jnp.linspace(-0.1, 0.1, 3, dtype=jnp.float32)
    v0 = 1.0 + jnp.linspace(0.0, 0.2, 3, dtype=jnp.float32)
    p["bn0_scale"], p["bn0_shift"] = bn_fold(g0, b0, m0, v0)

    p["w1"] = rand(keys[2], (16, 3, 5, 5))              # Conv2d(3, 16, 5)  (OIHW)
    p["b1"] = rand(keys[3], (16,))
    g1 = 1.0 + rand(keys[4], (16,), 0.1)
    bb1 = rand(keys[5], (16,), 0.1)
    m1 = jnp.linspace(-0.05, 0.05, 16, dtype=jnp.float32)
    v1 = 1.0 + jnp.linspace(0.0, 0.1, 16, dtype=jnp.float32)
    p["bn1_scale"], p["bn1_shift"] = bn_fold(g1, bb1, m1, v1)

    p["w2"] = rand(keys[6], (16, 16, 5, 5))             # Conv2d(16, 16, 5)
    p["b2"] = rand(keys[7], (16,))
    g2 = 1.0 + rand(keys[8], (16,), 0.1)
    bb2 = rand(keys[9], (16,), 0.1)
    m2 = jnp.linspace(-0.05, 0.05, 16, dtype=jnp.float32)
    v2 = 1.0 + jnp.linspace(0.0, 0.15, 16, dtype=jnp.float32)
    p["bn2_scale"], p["bn2_shift"] = bn_fold(g2, bb2, m2, v2)

    p["w3"] = rand(keys[10], (16, 16, 3, 3))            # Conv2d(16, 16, 3)
    p["b3"] = rand(keys[11], (16,))

    p["fc1_w"] = rand(keys[12], (FC1, FDIM))            # Linear(576, 16)  (out, in)
    p["fc1_b"] = rand(keys[13], (FC1,))
    p["fc2_w"] = rand(keys[14], (NOUT, FC1))            # Linear(16, 2)
    p["fc2_b"] = rand(keys[15], (NOUT,))
    return p


# ----------------------------------------------------------------------------
# Pure-JAX reference (uses the original, UNfolded parameters)
# ----------------------------------------------------------------------------
def reference_forward(x, p):
    def bn(y, scale, shift):
        return y * scale[None, :, None, None] + shift[None, :, None, None]

    def conv(y, w, b):
        y = jax.lax.conv_general_dilated(
            y, w, (1, 1), "VALID", dimension_numbers=("NCHW", "OIHW", "NCHW"))
        return y + b[None, :, None, None]

    y = bn(x, p["bn0_scale"], p["bn0_shift"])
    y = conv(y, p["w1"], p["b1"])
    y = jnp.maximum(bn(y, p["bn1_scale"], p["bn1_shift"]), 0.0)
    y = conv(y, p["w2"], p["b2"])
    y = jnp.maximum(bn(y, p["bn2_scale"], p["bn2_shift"]), 0.0)
    y = conv(y, p["w3"], p["b3"])
    y = y.reshape(y.shape[0], -1)                       # NCHW flatten (c, h, w)
    y = jnp.maximum(y @ p["fc1_w"].T + p["fc1_b"], 0.0)
    return y @ p["fc2_w"].T + p["fc2_b"]


if __name__ == "__main__":
    key = jax.random.PRNGKey(0)
    k_params, k_x = jax.random.split(key)
    params = init_params(k_params)
    kparams = prepare_kernel_params(params)             # one-time BN fold + prepack
    x = jax.random.normal(k_x, (N, CIN, H, W), dtype=jnp.float32)

    out = jax.block_until_ready(road_detector_forward(x, kparams))
    ref = jax.block_until_ready(reference_forward(x, params))

    if out.shape != (N, NOUT):
        raise AssertionError(f"bad output shape {out.shape}")
    if not jnp.allclose(out, ref, rtol=2e-2, atol=2e-2):
        raise AssertionError(f"mismatch vs reference:\n{out}\n{ref}")

    print("KERNEL_OK")
</pallas_src>

<mosaic_0001>
module attributes {stable_mosaic.version = 11 : i64} {
  func.func @fused_forward_kernel(%arg0: i32, %arg1: memref<2x16x48xf32, #tpu.memory_space<vmem>>, %arg2: memref<240x192xbf16, #tpu.memory_space<vmem>>, %arg3: memref<1x192xf32, #tpu.memory_space<vmem>>, %arg4: memref<960x128xbf16, #tpu.memory_space<vmem>>, %arg5: memref<1x128xf32, #tpu.memory_space<vmem>>, %arg6: memref<384x96xbf16, #tpu.memory_space<vmem>>, %arg7: memref<1x96xf32, #tpu.memory_space<vmem>>, %arg8: memref<576x16xbf16, #tpu.memory_space<vmem>>, %arg9: memref<1x16xf32, #tpu.memory_space<vmem>>, %arg10: memref<16x2xf32, #tpu.memory_space<vmem>>, %arg11: memref<1x2xf32, #tpu.memory_space<vmem>>, %arg12: memref<2x2xf32, #tpu.memory_space<vmem>>, %arg13: memref<24x240xbf16, #tpu.memory_space<vmem>>, %arg14: memref<16x960xbf16, #tpu.memory_space<vmem>>, %arg15: memref<12x384xbf16, #tpu.memory_space<vmem>>, %arg16: memref<2x576xbf16, #tpu.memory_space<vmem>>) attributes {dimension_semantics = [#tpu.dimension_semantics<parallel>], iteration_bounds = array<i64: 1>, scalar_prefetch = 0 : i64, scratch_operands = 4 : i64, tpu.core_type = #tpu.core_type<tc>, window_params = [{transform_indices = @transform_0, window_bounds = array<i64: 2, 16, 48>}, {pipeline_mode = #tpu.pipeline_mode<synchronous>, transform_indices = @transform_1, window_bounds = array<i64: 240, 192>}, {pipeline_mode = #tpu.pipeline_mode<synchronous>, transform_indices = @transform_2, window_bounds = array<i64: 1, 192>}, {pipeline_mode = #tpu.pipeline_mode<synchronous>, transform_indices = @transform_3, window_bounds = array<i64: 960, 128>}, {pipeline_mode = #tpu.pipeline_mode<synchronous>, transform_indices = @transform_4, window_bounds = array<i64: 1, 128>}, {pipeline_mode = #tpu.pipeline_mode<synchronous>, transform_indices = @transform_5, window_bounds = array<i64: 384, 96>}, {pipeline_mode = #tpu.pipeline_mode<synchronous>, transform_indices = @transform_6, window_bounds = array<i64: 1, 96>}, {pipeline_mode = #tpu.pipeline_mode<synchronous>, transform_indices = @transform_7, window_bounds = array<i64: 576, 16>}, {pipeline_mode = #tpu.pipeline_mode<synchronous>, transform_indices = @transform_8, window_bounds = array<i64: 1, 16>}, {pipeline_mode = #tpu.pipeline_mode<synchronous>, transform_indices = @transform_9, window_bounds = array<i64: 16, 2>}, {pipeline_mode = #tpu.pipeline_mode<synchronous>, transform_indices = @transform_10, window_bounds = array<i64: 1, 2>}, {transform_indices = @transform_11, window_bounds = array<i64: 2, 2>}]} {
    %c0 = arith.constant 0 : index
    %c0_0 = arith.constant 0 : index
    %c0_1 = arith.constant 0 : index
    %0 = vector.load %arg1[%c0, %c0_0, %c0_1] : memref<2x16x48xf32, #tpu.memory_space<vmem>>, vector<2x16x48xf32>
    %1 = arith.truncf %0 : vector<2x16x48xf32> to vector<2x16x48xbf16>
    %2 = vector.extract_strided_slice %1 {offsets = [0, 0, 0], sizes = [1, 12, 48], strides = [1, 1, 1]} : vector<2x16x48xbf16> to vector<1x12x48xbf16>
    %3 = vector.shape_cast %2 : vector<1x12x48xbf16> to vector<12x48xbf16>
    %c0_2 = arith.constant 0 : index
    %c0_3 = arith.constant 0 : index
    %4 = vector.load %arg13[%c0_2, %c0_3] : memref<24x240xbf16, #tpu.memory_space<vmem>>, vector<12x48xbf16>
    tpu.vector_store %arg13[%c0_2, %c0_3], %3 {strides = array<i32>} : memref<24x240xbf16, #tpu.memory_space<vmem>>, vector<12x48xbf16>,
    %5 = vector.extract_strided_slice %1 {offsets = [0, 1, 0], sizes = [1, 12, 48], strides = [1, 1, 1]} : vector<2x16x48xbf16> to vector<1x12x48xbf16>
    %6 = vector.shape_cast %5 : vector<1x12x48xbf16> to vector<12x48xbf16>
    %c0_4 = arith.constant 0 : index
    %c48 = arith.constant 48 : index
    %7 = vector.load %arg13[%c0_4, %c48] : memref<24x240xbf16, #tpu.memory_space<vmem>>, vector<12x48xbf16>
    tpu.vector_store %arg13[%c0_4, %c48], %6 {strides = array<i32>} : memref<24x240xbf16, #tpu.memory_space<vmem>>, vector<12x48xbf16>,
    %8 = vector.extract_strided_slice %1 {offsets = [0, 2, 0], sizes = [1, 12, 48], strides = [1, 1, 1]} : vector<2x16x48xbf16> to vector<1x12x48xbf16>
    %9 = vector.shape_cast %8 : vector<1x12x48xbf16> to vector<12x48xbf16>
    %c0_5 = arith.constant 0 : index
    %c96 = arith.constant 96 : index
    %10 = vector.load %arg13[%c0_5, %c96] : memref<24x240xbf16, #tpu.memory_space<vmem>>, vector<12x48xbf16>
    tpu.vector_store %arg13[%c0_5, %c96], %9 {strides = array<i32>} : memref<24x240xbf16, #tpu.memory_space<vmem>>, vector<12x48xbf16>,
    %11 = vector.extract_strided_slice %1 {offsets = [0, 3, 0], sizes = [1, 12, 48], strides = [1, 1, 1]} : vector<2x16x48xbf16> to vector<1x12x48xbf16>
    %12 = vector.shape_cast %11 : vector<1x12x48xbf16> to vector<12x48xbf16>
    %c0_6 = arith.constant 0 : index
    %c144 = arith.constant 144 : index
    %13 = vector.load %arg13[%c0_6, %c144] : memref<24x240xbf16, #tpu.memory_space<vmem>>, vector<12x48xbf16>
    tpu.vector_store %arg13[%c0_6, %c144], %12 {strides = array<i32>} : memref<24x240xbf16, #tpu.memory_space<vmem>>, vector<12x48xbf16>,
    %14 = vector.extract_strided_slice %1 {offsets = [0, 4, 0], sizes = [1, 12, 48], strides = [1, 1, 1]} : vector<2x16x48xbf16> to vector<1x12x48xbf16>
    %15 = vector.shape_cast %14 : vector<1x12x48xbf16> to vector<12x48xbf16>
    %c0_7 = arith.constant 0 : index
    %c192 = arith.constant 192 : index
    %16 = vector.load %arg13[%c0_7, %c192] : memref<24x240xbf16, #tpu.memory_space<vmem>>, vector<12x48xbf16>
    tpu.vector_store %arg13[%c0_7, %c192], %15 {strides = array<i32>} : memref<24x240xbf16, #tpu.memory_space<vmem>>, vector<12x48xbf16>,
    %17 = vector.extract_strided_slice %1 {offsets = [1, 0, 0], sizes = [1, 12, 48], strides = [1, 1, 1]} : vector<2x16x48xbf16> to vector<1x12x48xbf16>
    %18 = vector.shape_cast %17 : vector<1x12x48xbf16> to vector<12x48xbf16>
    %c12 = arith.constant 12 : index
    %c0_8 = arith.constant 0 : index
    %19 = vector.load %arg13[%c12, %c0_8] : memref<24x240xbf16, #tpu.memory_space<vmem>>, vector<12x48xbf16>
    tpu.vector_store %arg13[%c12, %c0_8], %18 {strides = array<i32>} : memref<24x240xbf16, #tpu.memory_space<vmem>>, vector<12x48xbf16>,
    %20 = vector.extract_strided_slice %1 {offsets = [1, 1, 0], sizes = [1, 12, 48], strides = [1, 1, 1]} : vector<2x16x48xbf16> to vector<1x12x48xbf16>
    %21 = vector.shape_cast %20 : vector<1x12x48xbf16> to vector<12x48xbf16>
    %c12_9 = arith.constant 12 : index
    %c48_10 = arith.constant 48 : index
    %22 = vector.load %arg13[%c12_9, %c48_10] : memref<24x240xbf16, #tpu.memory_space<vmem>>, vector<12x48xbf16>
    tpu.vector_store %arg13[%c12_9, %c48_10], %21 {strides = array<i32>} : memref<24x240xbf16, #tpu.memory_space<vmem>>, vector<12x48xbf16>,
    %23 = vector.extract_strided_slice %1 {offsets = [1, 2, 0], sizes = [1, 12, 48], strides = [1, 1, 1]} : vector<2x16x48xbf16> to vector<1x12x48xbf16>
    %24 = vector.shape_cast %23 : vector<1x12x48xbf16> to vector<12x48xbf16>
    %c12_11 = arith.constant 12 : index
    %c96_12 = arith.constant 96 : index
    %25 = vector.load %arg13[%c12_11, %c96_12] : memref<24x240xbf16, #tpu.memory_space<vmem>>, vector<12x48xbf16>
    tpu.vector_store %arg13[%c12_11, %c96_12], %24 {strides = array<i32>} : memref<24x240xbf16, #tpu.memory_space<vmem>>, vector<12x48xbf16>,
    %26 = vector.extract_strided_slice %1 {offsets = [1, 3, 0], sizes = [1, 12, 48], strides = [1, 1, 1]} : vector<2x16x48xbf16> to vector<1x12x48xbf16>
    %27 = vector.shape_cast %26 : vector<1x12x48xbf16> to vector<12x48xbf16>
    %c12_13 = arith.constant 12 : index
    %c144_14 = arith.constant 144 : index
    %28 = vector.load %arg13[%c12_13, %c144_14] : memref<24x240xbf16, #tpu.memory_space<vmem>>, vector<12x48xbf16>
    tpu.vector_store %arg13[%c12_13, %c144_14], %27 {strides = array<i32>} : memref<24x240xbf16, #tpu.memory_space<vmem>>, vector<12x48xbf16>,
    %29 = vector.extract_strided_slice %1 {offsets = [1, 4, 0], sizes = [1, 12, 48], strides = [1, 1, 1]} : vector<2x16x48xbf16> to vector<1x12x48xbf16>
    %30 = vector.shape_cast %29 : vector<1x12x48xbf16> to vector<12x48xbf16>
    %c12_15 = arith.constant 12 : index
    %c192_16 = arith.constant 192 : index
    %31 = vector.load %arg13[%c12_15, %c192_16] : memref<24x240xbf16, #tpu.memory_space<vmem>>, vector<12x48xbf16>
    tpu.vector_store %arg13[%c12_15, %c192_16], %30 {strides = array<i32>} : memref<24x240xbf16, #tpu.memory_space<vmem>>, vector<12x48xbf16>,
    %c0_17 = arith.constant 0 : index
    %c0_18 = arith.constant 0 : index
    %32 = vector.load %arg13[%c0_17, %c0_18] : memref<24x240xbf16, #tpu.memory_space<vmem>>, vector<24x240xbf16>
    %c0_19 = arith.constant 0 : index
    %c0_20 = arith.constant 0 : index
    %33 = vector.load %arg2[%c0_19, %c0_20] : memref<240x192xbf16, #tpu.memory_space<vmem>>, vector<240x192xbf16>
    %cst = arith.constant dense<0.000000e+00> : vector<24x192xf32>
    %34 = tpu.matmul %32, %33, %cst {dimension_numbers = #tpu.dot_dimension_numbers<[1], [0], [0], [1], [0, 0, 1, 1], [], []>} : vector<24x240xbf16>, vector<240x192xbf16>, vector<24x192xf32> -> vector<24x192xf32>
    %c0_21 = arith.constant 0 : index
    %c0_22 = arith.constant 0 : index
    %35 = vector.load %arg3[%c0_21, %c0_22] : memref<1x192xf32, #tpu.memory_space<vmem>>, vector<1x192xf32>
    %36 = vector.broadcast %35 : vector<1x192xf32> to vector<24x192xf32>
    %37 = arith.addf %34, %36 : vector<24x192xf32>
    %cst_23 = arith.constant 0.000000e+00 : f32
    %38 = vector.broadcast %cst_23 : f32 to vector<24x192xf32>
    %39 = arith.maximumf %37, %38 : vector<24x192xf32>
    %40 = arith.truncf %39 : vector<24x192xf32> to vector<24x192xbf16>
    %41 = vector.extract_strided_slice %40 {offsets = [0, 0], sizes = [8, 192], strides = [1, 1]} : vector<24x192xbf16> to vector<8x192xbf16>
    %c0_24 = arith.constant 0 : index
    %c0_25 = arith.constant 0 : index
    %42 = vector.load %arg14[%c0_24, %c0_25] : memref<16x960xbf16, #tpu.memory_space<vmem>>, vector<8x192xbf16>
    tpu.vector_store %arg14[%c0_24, %c0_25], %41 {strides = array<i32>} : memref<16x960xbf16, #tpu.memory_space<vmem>>, vector<8x192xbf16>,
    %43 = vector.extract_strided_slice %40 {offsets = [1, 0], sizes = [8, 192], strides = [1, 1]} : vector<24x192xbf16> to vector<8x192xbf16>
    %c0_26 = arith.constant 0 : index
    %c192_27 = arith.constant 192 : index
    %44 = vector.load %arg14[%c0_26, %c192_27] : memref<16x960xbf16, #tpu.memory_space<vmem>>, vector<8x192xbf16>
    tpu.vector_store %arg14[%c0_26, %c192_27], %43 {strides = array<i32>} : memref<16x960xbf16, #tpu.memory_space<vmem>>, vector<8x192xbf16>,
    %45 = vector.extract_strided_slice %40 {offsets = [2, 0], sizes = [8, 192], strides = [1, 1]} : vector<24x192xbf16> to vector<8x192xbf16>
    %c0_28 = arith.constant 0 : index
    %c384 = arith.constant 384 : index
    %46 = vector.load %arg14[%c0_28, %c384] : memref<16x960xbf16, #tpu.memory_space<vmem>>, vector<8x192xbf16>
    tpu.vector_store %arg14[%c0_28, %c384], %45 {strides = array<i32>} : memref<16x960xbf16, #tpu.memory_space<vmem>>, vector<8x192xbf16>,
    %47 = vector.extract_strided_slice %40 {offsets = [3, 0], sizes = [8, 192], strides = [1, 1]} : vector<24x192xbf16> to vector<8x192xbf16>
    %c0_29 = arith.constant 0 : index
    %c576 = arith.constant 576 : index
    %48 = vector.load %arg14[%c0_29, %c576] : memref<16x960xbf16, #tpu.memory_space<vmem>>, vector<8x192xbf16>
    tpu.vector_store %arg14[%c0_29, %c576], %47 {strides = array<i32>} : memref<16x960xbf16, #tpu.memory_space<vmem>>, vector<8x192xbf16>,
    %49 = vector.extract_strided_slice %40 {offsets = [4, 0], sizes = [8, 192], strides = [1, 1]} : vector<24x192xbf16> to vector<8x192xbf16>
    %c0_30 = arith.constant 0 : index
    %c768 = arith.constant 768 : index
    %50 = vector.load %arg14[%c0_30, %c768] : memref<16x960xbf16, #tpu.memory_space<vmem>>, vector<8x192xbf16>
    tpu.vector_store %arg14[%c0_30, %c768], %49 {strides = array<i32>} : memref<16x960xbf16, #tpu.memory_space<vmem>>, vector<8x192xbf16>,
    %51 = vector.extract_strided_slice %40 {offsets = [12, 0], sizes = [8, 192], strides = [1, 1]} : vector<24x192xbf16> to vector<8x192xbf16>
    %c8 = arith.constant 8 : index
    %c0_31 = arith.constant 0 : index
    %52 = vector.load %arg14[%c8, %c0_31] : memref<16x960xbf16, #tpu.memory_space<vmem>>, vector<8x192xbf16>
    tpu.vector_store %arg14[%c8, %c0_31], %51 {strides = array<i32>} : memref<16x960xbf16, #tpu.memory_space<vmem>>, vector<8x192xbf16>,
    %53 = vector.extract_strided_slice %40 {offsets = [13, 0], sizes = [8, 192], strides = [1, 1]} : vector<24x192xbf16> to vector<8x192xbf16>
    %c8_32 = arith.constant 8 : index
    %c192_33 = arith.constant 192 : index
    %54 = vector.load %arg14[%c8_32, %c192_33] : memref<16x960xbf16, #tpu.memory_space<vmem>>, vector<8x192xbf16>
    tpu.vector_store %arg14[%c8_32, %c192_33], %53 {strides = array<i32>} : memref<16x960xbf16, #tpu.memory_space<vmem>>, vector<8x192xbf16>,
    %55 = vector.extract_strided_slice %40 {offsets = [14, 0], sizes = [8, 192], strides = [1, 1]} : vector<24x192xbf16> to vector<8x192xbf16>
    %c8_34 = arith.constant 8 : index
    %c384_35 = arith.constant 384 : index
    %56 = vector.load %arg14[%c8_34, %c384_35] : memref<16x960xbf16, #tpu.memory_space<vmem>>, vector<8x192xbf16>
    tpu.vector_store %arg14[%c8_34, %c384_35], %55 {strides = array<i32>} : memref<16x960xbf16, #tpu.memory_space<vmem>>, vector<8x192xbf16>,
    %57 = vector.extract_strided_slice %40 {offsets = [15, 0], sizes = [8, 192], strides = [1, 1]} : vector<24x192xbf16> to vector<8x192xbf16>
    %c8_36 = arith.constant 8 : index
    %c576_37 = arith.constant 576 : index
    %58 = vector.load %arg14[%c8_36, %c576_37] : memref<16x960xbf16, #tpu.memory_space<vmem>>, vector<8x192xbf16>
    tpu.vector_store %arg14[%c8_36, %c576_37], %57 {strides = array<i32>} : memref<16x960xbf16, #tpu.memory_space<vmem>>, vector<8x192xbf16>,
    %59 = vector.extract_strided_slice %40 {offsets = [16, 0], sizes = [8, 192], strides = [1, 1]} : vector<24x192xbf16> to vector<8x192xbf16>
    %c8_38 = arith.constant 8 : index
    %c768_39 = arith.constant 768 : index
    %60 = vector.load %arg14[%c8_38, %c768_39] : memref<16x960xbf16, #tpu.memory_space<vmem>>, vector<8x192xbf16>
    tpu.vector_store %arg14[%c8_38, %c768_39], %59 {strides = array<i32>} : memref<16x960xbf16, #tpu.memory_space<vmem>>, vector<8x192xbf16>,
    %c0_40 = arith.constant 0 : index
    %c0_41 = arith.constant 0 : index
    %61 = vector.load %arg14[%c0_40, %c0_41] : memref<16x960xbf16, #tpu.memory_space<vmem>>, vector<16x960xbf16>
    %c0_42 = arith.constant 0 : index
    %c0_43 = arith.constant 0 : index
    %62 = vector.load %arg4[%c0_42, %c0_43] : memref<960x128xbf16, #tpu.memory_space<vmem>>, vector<960x128xbf16>
    %cst_44 = arith.constant dense<0.000000e+00> : vector<16x128xf32>
    %63 = tpu.matmul %61, %62, %cst_44 {dimension_numbers = #tpu.dot_dimension_numbers<[1], [0], [0], [1], [0, 0, 1, 1], [], []>} : vector<16x960xbf16>, vector<960x128xbf16>, vector<16x128xf32> -> vector<16x128xf32>
    %c0_45 = arith.constant 0 : index
    %c0_46 = arith.constant 0 : index
    %64 = vector.load %arg5[%c0_45, %c0_46] : memref<1x128xf32, #tpu.memory_space<vmem>>, vector<1x128xf32>
    %65 = vector.broadcast %64 : vector<1x128xf32> to vector<16x128xf32>
    %66 = arith.addf %63, %65 : vector<16x128xf32>
    %cst_47 = arith.constant 0.000000e+00 : f32
    %67 = vector.broadcast %cst_47 : f32 to vector<16x128xf32>
    %68 = arith.maximumf %66, %67 : vector<16x128xf32>
    %69 = arith.truncf %68 : vector<16x128xf32> to vector<16x128xbf16>
    %70 = vector.extract_strided_slice %69 {offsets = [0, 0], sizes = [6, 128], strides = [1, 1]} : vector<16x128xbf16> to vector<6x128xbf16>
    %c0_48 = arith.constant 0 : index
    %c0_49 = arith.constant 0 : index
    %71 = vector.load %arg15[%c0_48, %c0_49] : memref<12x384xbf16, #tpu.memory_space<vmem>>, vector<6x128xbf16>
    tpu.vector_store %arg15[%c0_48, %c0_49], %70 {strides = array<i32>} : memref<12x384xbf16, #tpu.memory_space<vmem>>, vector<6x128xbf16>,
    %72 = vector.extract_strided_slice %69 {offsets = [1, 0], sizes = [6, 128], strides = [1, 1]} : vector<16x128xbf16> to vector<6x128xbf16>
    %c0_50 = arith.constant 0 : index
    %c128 = arith.constant 128 : index
    %73 = vector.load %arg15[%c0_50, %c128] : memref<12x384xbf16, #tpu.memory_space<vmem>>, vector<6x128xbf16>
    tpu.vector_store %arg15[%c0_50, %c128], %72 {strides = array<i32>} : memref<12x384xbf16, #tpu.memory_space<vmem>>, vector<6x128xbf16>,
    %74 = vector.extract_strided_slice %69 {offsets = [2, 0], sizes = [6, 128], strides = [1, 1]} : vector<16x128xbf16> to vector<6x128xbf16>
    %c0_51 = arith.constant 0 : index
    %c256 = arith.constant 256 : index
    %75 = vector.load %arg15[%c0_51, %c256] : memref<12x384xbf16, #tpu.memory_space<vmem>>, vector<6x128xbf16>
    tpu.vector_store %arg15[%c0_51, %c256], %74 {strides = array<i32>} : memref<12x384xbf16, #tpu.memory_space<vmem>>, vector<6x128xbf16>,
    %76 = vector.extract_strided_slice %69 {offsets = [8, 0], sizes = [6, 128], strides = [1, 1]} : vector<16x128xbf16> to vector<6x128xbf16>
    %c6 = arith.constant 6 : index
    %c0_52 = arith.constant 0 : index
    %77 = vector.load %arg15[%c6, %c0_52] : memref<12x384xbf16, #tpu.memory_space<vmem>>, vector<6x128xbf16>
    tpu.vector_store %arg15[%c6, %c0_52], %76 {strides = array<i32>} : memref<12x384xbf16, #tpu.memory_space<vmem>>, vector<6x128xbf16>,
    %78 = vector.extract_strided_slice %69 {offsets = [9, 0], sizes = [6, 128], strides = [1, 1]} : vector<16x128xbf16> to vector<6x128xbf16>
    %c6_53 = arith.constant 6 : index
    %c128_54 = arith.constant 128 : index
    %79 = vector.load %arg15[%c6_53, %c128_54] : memref<12x384xbf16, #tpu.memory_space<vmem>>, vector<6x128xbf16>
    tpu.vector_store %arg15[%c6_53, %c128_54], %78 {strides = array<i32>} : memref<12x384xbf16, #tpu.memory_space<vmem>>, vector<6x128xbf16>,
    %80 = vector.extract_strided_slice %69 {offsets = [10, 0], sizes = [6, 128], strides = [1, 1]} : vector<16x128xbf16> to vector<6x128xbf16>
    %c6_55 = arith.constant 6 : index
    %c256_56 = arith.constant 256 : index
    %81 = vector.load %arg15[%c6_55, %c256_56] : memref<12x384xbf16, #tpu.memory_space<vmem>>, vector<6x128xbf16>
    tpu.vector_store %arg15[%c6_55, %c256_56], %80 {strides = array<i32>} : memref<12x384xbf16, #tpu.memory_space<vmem>>, vector<6x128xbf16>,
    %c0_57 = arith.constant 0 : index
    %c0_58 = arith.constant 0 : index
    %82 = vector.load %arg15[%c0_57, %c0_58] : memref<12x384xbf16, #tpu.memory_space<vmem>>, vector<12x384xbf16>
    %c0_59 = arith.constant 0 : index
    %c0_60 = arith.constant 0 : index
    %83 = vector.load %arg6[%c0_59, %c0_60] : memref<384x96xbf16, #tpu.memory_space<vmem>>, vector<384x96xbf16>
    %cst_61 = arith.constant dense<0.000000e+00> : vector<12x96xf32>
    %84 = tpu.matmul %82, %83, %cst_61 {dimension_numbers = #tpu.dot_dimension_numbers<[1], [0], [0], [1], [0, 0, 1, 1], [], []>} : vector<12x384xbf16>, vector<384x96xbf16>, vector<12x96xf32> -> vector<12x96xf32>
    %c0_62 = arith.constant 0 : index
    %c0_63 = arith.constant 0 : index
    %85 = vector.load %arg7[%c0_62, %c0_63] : memref<1x96xf32, #tpu.memory_space<vmem>>, vector<1x96xf32>
    %86 = vector.broadcast %85 : vector<1x96xf32> to vector<12x96xf32>
    %87 = arith.addf %84, %86 : vector<12x96xf32>
    %88 = arith.truncf %87 : vector<12x96xf32> to vector<12x96xbf16>
    %89 = vector.extract_strided_slice %88 {offsets = [0, 0], sizes = [1, 96], strides = [1, 1]} : vector<12x96xbf16> to vector<1x96xbf16>
    %c0_64 = arith.constant 0 : index
    %c0_65 = arith.constant 0 : index
    %90 = vector.load %arg16[%c0_64, %c0_65] : memref<2x576xbf16, #tpu.memory_space<vmem>>, vector<1x96xbf16>
    tpu.vector_store %arg16[%c0_64, %c0_65], %89 {strides = array<i32>} : memref<2x576xbf16, #tpu.memory_space<vmem>>, vector<1x96xbf16>,
    %91 = vector.extract_strided_slice %88 {offsets = [1, 0], sizes = [1, 96], strides = [1, 1]} : vector<12x96xbf16> to vector<1x96xbf16>
    %c0_66 = arith.constant 0 : index
    %c96_67 = arith.constant 96 : index
    %92 = vector.load %arg16[%c0_66, %c96_67] : memref<2x576xbf16, #tpu.memory_space<vmem>>, vector<1x96xbf16>
    tpu.vector_store %arg16[%c0_66, %c96_67], %91 {strides = array<i32>} : memref<2x576xbf16, #tpu.memory_space<vmem>>, vector<1x96xbf16>,
    %93 = vector.extract_strided_slice %88 {offsets = [2, 0], sizes = [1, 96], strides = [1, 1]} : vector<12x96xbf16> to vector<1x96xbf16>
    %c0_68 = arith.constant 0 : index
    %c192_69 = arith.constant 192 : index
    %94 = vector.load %arg16[%c0_68, %c192_69] : memref<2x576xbf16, #tpu.memory_space<vmem>>, vector<1x96xbf16>
    tpu.vector_store %arg16[%c0_68, %c192_69], %93 {strides = array<i32>} : memref<2x576xbf16, #tpu.memory_space<vmem>>, vector<1x96xbf16>,
    %95 = vector.extract_strided_slice %88 {offsets = [3, 0], sizes = [1, 96], strides = [1, 1]} : vector<12x96xbf16> to vector<1x96xbf16>
    %c0_70 = arith.constant 0 : index
    %c288 = arith.constant 288 : index
    %96 = vector.load %arg16[%c0_70, %c288] : memref<2x576xbf16, #tpu.memory_space<vmem>>, vector<1x96xbf16>
    tpu.vector_store %arg16[%c0_70, %c288], %95 {strides = array<i32>} : memref<2x576xbf16, #tpu.memory_space<vmem>>, vector<1x96xbf16>,
    %97 = vector.extract_strided_slice %88 {offsets = [4, 0], sizes = [1, 96], strides = [1, 1]} : vector<12x96xbf16> to vector<1x96xbf16>
    %c0_71 = arith.constant 0 : index
    %c384_72 = arith.constant 384 : index
    %98 = vector.load %arg16[%c0_71, %c384_72] : memref<2x576xbf16, #tpu.memory_space<vmem>>, vector<1x96xbf16>
    tpu.vector_store %arg16[%c0_71, %c384_72], %97 {strides = array<i32>} : memref<2x576xbf16, #tpu.memory_space<vmem>>, vector<1x96xbf16>,
    %99 = vector.extract_strided_slice %88 {offsets = [5, 0], sizes = [1, 96], strides = [1, 1]} : vector<12x96xbf16> to vector<1x96xbf16>
    %c0_73 = arith.constant 0 : index
    %c480 = arith.constant 480 : index
    %100 = vector.load %arg16[%c0_73, %c480] : memref<2x576xbf16, #tpu.memory_space<vmem>>, vector<1x96xbf16>
    tpu.vector_store %arg16[%c0_73, %c480], %99 {strides = array<i32>} : memref<2x576xbf16, #tpu.memory_space<vmem>>, vector<1x96xbf16>,
    %101 = vector.extract_strided_slice %88 {offsets = [6, 0], sizes = [1, 96], strides = [1, 1]} : vector<12x96xbf16> to vector<1x96xbf16>
    %c1 = arith.constant 1 : index
    %c0_74 = arith.constant 0 : index
    %102 = vector.load %arg16[%c1, %c0_74] : memref<2x576xbf16, #tpu.memory_space<vmem>>, vector<1x96xbf16>
    tpu.vector_store %arg16[%c1, %c0_74], %101 {strides = array<i32>} : memref<2x576xbf16, #tpu.memory_space<vmem>>, vector<1x96xbf16>,
    %103 = vector.extract_strided_slice %88 {offsets = [7, 0], sizes = [1, 96], strides = [1, 1]} : vector<12x96xbf16> to vector<1x96xbf16>
    %c1_75 = arith.constant 1 : index
    %c96_76 = arith.constant 96 : index
    %104 = vector.load %arg16[%c1_75, %c96_76] : memref<2x576xbf16, #tpu.memory_space<vmem>>, vector<1x96xbf16>
    tpu.vector_store %arg16[%c1_75, %c96_76], %103 {strides = array<i32>} : memref<2x576xbf16, #tpu.memory_space<vmem>>, vector<1x96xbf16>,
    %105 = vector.extract_strided_slice %88 {offsets = [8, 0], sizes = [1, 96], strides = [1, 1]} : vector<12x96xbf16> to vector<1x96xbf16>
    %c1_77 = arith.constant 1 : index
    %c192_78 = arith.constant 192 : index
    %106 = vector.load %arg16[%c1_77, %c192_78] : memref<2x576xbf16, #tpu.memory_space<vmem>>, vector<1x96xbf16>
    tpu.vector_store %arg16[%c1_77, %c192_78], %105 {strides = array<i32>} : memref<2x576xbf16, #tpu.memory_space<vmem>>, vector<1x96xbf16>,
    %107 = vector.extract_strided_slice %88 {offsets = [9, 0], sizes = [1, 96], strides = [1, 1]} : vector<12x96xbf16> to vector<1x96xbf16>
    %c1_79 = arith.constant 1 : index
    %c288_80 = arith.constant 288 : index
    %108 = vector.load %arg16[%c1_79, %c288_80] : memref<2x576xbf16, #tpu.memory_space<vmem>>, vector<1x96xbf16>
    tpu.vector_store %arg16[%c1_79, %c288_80], %107 {strides = array<i32>} : memref<2x576xbf16, #tpu.memory_space<vmem>>, vector<1x96xbf16>,
    %109 = vector.extract_strided_slice %88 {offsets = [10, 0], sizes = [1, 96], strides = [1, 1]} : vector<12x96xbf16> to vector<1x96xbf16>
    %c1_81 = arith.constant 1 : index
    %c384_82 = arith.constant 384 : index
    %110 = vector.load %arg16[%c1_81, %c384_82] : memref<2x576xbf16, #tpu.memory_space<vmem>>, vector<1x96xbf16>
    tpu.vector_store %arg16[%c1_81, %c384_82], %109 {strides = array<i32>} : memref<2x576xbf16, #tpu.memory_space<vmem>>, vector<1x96xbf16>,
    %111 = vector.extract_strided_slice %88 {offsets = [11, 0], sizes = [1, 96], strides = [1, 1]} : vector<12x96xbf16> to vector<1x96xbf16>
    %c1_83 = arith.constant 1 : index
    %c480_84 = arith.constant 480 : index
    %112 = vector.load %arg16[%c1_83, %c480_84] : memref<2x576xbf16, #tpu.memory_space<vmem>>, vector<1x96xbf16>
    tpu.vector_store %arg16[%c1_83, %c480_84], %111 {strides = array<i32>} : memref<2x576xbf16, #tpu.memory_space<vmem>>, vector<1x96xbf16>,
    %c0_85 = arith.constant 0 : index
    %c0_86 = arith.constant 0 : index
    %113 = vector.load %arg16[%c0_85, %c0_86] : memref<2x576xbf16, #tpu.memory_space<vmem>>, vector<2x576xbf16>
    %c0_87 = arith.constant 0 : index
    %c0_88 = arith.constant 0 : index
    %114 = vector.load %arg8[%c0_87, %c0_88] : memref<576x16xbf16, #tpu.memory_space<vmem>>, vector<576x16xbf16>
    %cst_89 = arith.constant dense<0.000000e+00> : vector<2x16xf32>
    %115 = tpu.matmul %113, %114, %cst_89 {dimension_numbers = #tpu.dot_dimension_numbers<[1], [0], [0], [1], [0, 0, 1, 1], [], []>} : vector<2x576xbf16>, vector<576x16xbf16>, vector<2x16xf32> -> vector<2x16xf32>
    %c0_90 = arith.constant 0 : index
    %c0_91 = arith.constant 0 : index
    %116 = vector.load %arg9[%c0_90, %c0_91] : memref<1x16xf32, #tpu.memory_space<vmem>>, vector<1x16xf32>
    %117 = vector.broadcast %116 : vector<1x16xf32> to vector<2x16xf32>
    %118 = arith.addf %115, %117 : vector<2x16xf32>
    %cst_92 = arith.constant 0.000000e+00 : f32
    %119 = vector.broadcast %cst_92 : f32 to vector<2x16xf32>
    %120 = arith.maximumf %118, %119 : vector<2x16xf32>
    %c0_93 = arith.constant 0 : index
    %c0_94 = arith.constant 0 : index
    %121 = vector.load %arg10[%c0_93, %c0_94] : memref<16x2xf32, #tpu.memory_space<vmem>>, vector<16x2xf32>
    %cst_95 = arith.constant dense<0.000000e+00> : vector<2x2xf32>
    %122 = tpu.matmul %120, %121, %cst_95 {dimension_numbers = #tpu.dot_dimension_numbers<[1], [0], [0], [1], [0, 0, 1, 1], [], []>} : vector<2x16xf32>, vector<16x2xf32>, vector<2x2xf32> -> vector<2x2xf32>
    %c0_96 = arith.constant 0 : index
    %c0_97 = arith.constant 0 : index
    %123 = vector.load %arg11[%c0_96, %c0_97] : memref<1x2xf32, #tpu.memory_space<vmem>>, vector<1x2xf32>
    %124 = vector.broadcast %123 : vector<1x2xf32> to vector<2x2xf32>
    %125 = arith.addf %122, %124 : vector<2x2xf32>
    %c0_98 = arith.constant 0 : index
    %c0_99 = arith.constant 0 : index
    %126 = vector.load %arg12[%c0_98, %c0_99] : memref<2x2xf32, #tpu.memory_space<vmem>>, vector<2x2xf32>
    tpu.vector_store %arg12[%c0_98, %c0_99], %125 {strides = array<i32>} : memref<2x2xf32, #tpu.memory_space<vmem>>, vector<2x2xf32>,
    return
  }
  func.func @transform_0(%arg0: i32) -> (i32, i32, i32) {
    %c0_i32 = arith.constant 0 : i32
    %c0_i32_0 = arith.constant 0 : i32
    %c0_i32_1 = arith.constant 0 : i32
    return %arg0, %c0_i32, %c0_i32_0 : i32, i32, i32
  }
  func.func @transform_1(%arg0: i32) -> (i32, i32) {
    %c0_i32 = arith.constant 0 : i32
    %c0_i32_0 = arith.constant 0 : i32
    %c0_i32_1 = arith.constant 0 : i32
    return %c0_i32, %c0_i32_0 : i32, i32
  }
  func.func @transform_2(%arg0: i32) -> (i32, i32) {
    %c0_i32 = arith.constant 0 : i32
    %c0_i32_0 = arith.constant 0 : i32
    %c0_i32_1 = arith.constant 0 : i32
    return %c0_i32, %c0_i32_0 : i32, i32
  }
  func.func @transform_3(%arg0: i32) -> (i32, i32) {
    %c0_i32 = arith.constant 0 : i32
    %c0_i32_0 = arith.constant 0 : i32
    %c0_i32_1 = arith.constant 0 : i32
    return %c0_i32, %c0_i32_0 : i32, i32
  }
  func.func @transform_4(%arg0: i32) -> (i32, i32) {
    %c0_i32 = arith.constant 0 : i32
    %c0_i32_0 = arith.constant 0 : i32
    %c0_i32_1 = arith.constant 0 : i32
    return %c0_i32, %c0_i32_0 : i32, i32
  }
  func.func @transform_5(%arg0: i32) -> (i32, i32) {
    %c0_i32 = arith.constant 0 : i32
    %c0_i32_0 = arith.constant 0 : i32
    %c0_i32_1 = arith.constant 0 : i32
    return %c0_i32, %c0_i32_0 : i32, i32
  }
  func.func @transform_6(%arg0: i32) -> (i32, i32) {
    %c0_i32 = arith.constant 0 : i32
    %c0_i32_0 = arith.constant 0 : i32
    %c0_i32_1 = arith.constant 0 : i32
    return %c0_i32, %c0_i32_0 : i32, i32
  }
  func.func @transform_7(%arg0: i32) -> (i32, i32) {
    %c0_i32 = arith.constant 0 : i32
    %c0_i32_0 = arith.constant 0 : i32
    %c0_i32_1 = arith.constant 0 : i32
    return %c0_i32, %c0_i32_0 : i32, i32
  }
  func.func @transform_8(%arg0: i32) -> (i32, i32) {
    %c0_i32 = arith.constant 0 : i32
    %c0_i32_0 = arith.constant 0 : i32
    %c0_i32_1 = arith.constant 0 : i32
    return %c0_i32, %c0_i32_0 : i32, i32
  }
  func.func @transform_9(%arg0: i32) -> (i32, i32) {
    %c0_i32 = arith.constant 0 : i32
    %c0_i32_0 = arith.constant 0 : i32
    %c0_i32_1 = arith.constant 0 : i32
    return %c0_i32, %c0_i32_0 : i32, i32
  }
  func.func @transform_10(%arg0: i32) -> (i32, i32) {
    %c0_i32 = arith.constant 0 : i32
    %c0_i32_0 = arith.constant 0 : i32
    %c0_i32_1 = arith.constant 0 : i32
    return %c0_i32, %c0_i32_0 : i32, i32
  }
  func.func @transform_11(%arg0: i32) -> (i32, i32) {
    %c0_i32 = arith.constant 0 : i32
    %c0_i32_0 = arith.constant 0 : i32
    return %arg0, %c0_i32 : i32, i32
  }
}

</mosaic_0001>

<llo_original>
// kernel: road_detector_forward.1
$region0: #{road_detector_forward.1}
  #allocation0 [shape = 'u32[]', space=smem, size = 0x4, offset = 0x4, fixed_abs, tag = 'smem constant byte address 0x4 - core index']
  #allocation1 [shape = 'u32[144,128]{1,0:T(1,128)}', space=vmem, size = 0x12000, scoped, tag = 'internal scratch']
  #allocation2 [shape = 'bf16[24,240]{1,0:T(8,128)(2,1)}', space=vmem, size = 0x3000, scoped, tag = 'scratch operand']
  #allocation3 [shape = 'bf16[16,960]{1,0:T(16,128)(2,1)}', space=vmem, size = 0x8000, scoped, tag = 'scratch operand']
  #allocation4 [shape = 'bf16[12,384]{1,0:T(8,128)(2,1)}', space=vmem, size = 0x3000, scoped, tag = 'scratch operand']
  #allocation5 [shape = 'bf16[2,576]{1,0:T(2,128)(2,1)}', space=vmem, size = 0xa00, scoped, tag = 'scratch operand']
  %s0 = inlined_call_operand.vmem [shape: f32[2,16,48], index: 0, kind: input, shape index: {}]
  %s1 = inlined_call_operand.vmem [shape: bf16[240,192], index: 1, kind: input, shape index: {}]
  %s2 = inlined_call_operand.vmem [shape: f32[1,192], index: 2, kind: input, shape index: {}]
  %s3 = inlined_call_operand.vmem [shape: bf16[960,128], index: 3, kind: input, shape index: {}]
  %s4 = inlined_call_operand.vmem [shape: f32[1,128], index: 4, kind: input, shape index: {}]
  %s5 = inlined_call_operand.vmem [shape: bf16[384,96], index: 5, kind: input, shape index: {}]
  %s6 = inlined_call_operand.vmem [shape: f32[1,96], index: 6, kind: input, shape index: {}]
  %s7 = inlined_call_operand.vmem [shape: bf16[576,16], index: 7, kind: input, shape index: {}]
  %s8 = inlined_call_operand.vmem [shape: f32[1,16], index: 8, kind: input, shape index: {}]
  %s9 = inlined_call_operand.vmem [shape: f32[16,2], index: 9, kind: input, shape index: {}]
  %s10 = inlined_call_operand.vmem [shape: f32[1,2], index: 10, kind: input, shape index: {}]
  %s11 = inlined_call_operand.hbm [shape: f32[2,2], index: 11, kind: output, shape index: {}]
  %s12 = sld [smem:[#allocation0]]
  $region54: #{road_detector_forward.1} parent=0
    _
  %s14 = ssub.s32 1, %s12
  %s15 = scalar_select 0, %s14, %s12
  $region1: #{road_detector_forward.1} parent=0
    #allocation6 [shape = 'u8[1024]{0}', space=vmem, size = 0x400, scoped, tag = 'output window, operand 0, single buffered']
    #allocation7 [shape = 's32[1]{0}', space=sflag, size = 0x4, scoped, tag = 'scoped memory for road_detector_forward.1']
    %16 = vsyncpa [#allocation7], 0
    // Predicated region
    $region2: #{road_detector_forward.1} parent=1 // pred_check
      _
    $region3: #{road_detector_forward.1} parent=1 // pred_check_branch
      %18 = sbr.rel (0) target = $region5
    $region4: #{road_detector_forward.1} parent=1 // pred_region
      _
    $region5: #{road_detector_forward.1} parent=1 // pred_fallthru
      _
    // Predicated region
    $region6: #{road_detector_forward.1} parent=1 // pred_check
      _
    $region7: #{road_detector_forward.1} parent=1 // pred_check_branch
      %20 = sbr.rel (0) target = $region9
    $region8: #{road_detector_forward.1} parent=1 // pred_region
      _
    $region9: #{road_detector_forward.1} parent=1 // pred_fallthru
      _
    // Predicated region
    $region10: #{road_detector_forward.1} parent=1 // pred_check
      _
    $region11: #{road_detector_forward.1} parent=1 // pred_check_branch
      %22 = sbr.rel (0) target = $region13
    $region12: #{road_detector_forward.1} parent=1 // pred_region
      _
    $region13: #{road_detector_forward.1} parent=1 // pred_fallthru
      _
    // Predicated region
    $region14: #{road_detector_forward.1} parent=1 // pred_check
      _
    $region15: #{road_detector_forward.1} parent=1 // pred_check_branch
      %24 = sbr.rel (0) target = $region17
    $region16: #{road_detector_forward.1} parent=1 // pred_region
      _
    $region17: #{road_detector_forward.1} parent=1 // pred_fallthru
      _
    // Predicated region
    $region18: #{road_detector_forward.1} parent=1 // pred_check
      _
    $region19: #{road_detector_forward.1} parent=1 // pred_check_branch
      %26 = sbr.rel (0) target = $region21
    $region20: #{road_detector_forward.1} parent=1 // pred_region
      _
    $region21: #{road_detector_forward.1} parent=1 // pred_fallthru
      _
    // Predicated region
    $region22: #{road_detector_forward.1} parent=1 // pred_check
      _
    $region23: #{road_detector_forward.1} parent=1 // pred_check_branch
      %28 = sbr.rel (0) target = $region25
    $region24: #{road_detector_forward.1} parent=1 // pred_region
      _
    $region25: #{road_detector_forward.1} parent=1 // pred_fallthru
      _
    // Predicated region
    $region26: #{road_detector_forward.1} parent=1 // pred_check
      _
    $region27: #{road_detector_forward.1} parent=1 // pred_check_branch
      %30 = sbr.rel (0) target = $region29
    $region28: #{road_detector_forward.1} parent=1 // pred_region
      _
    $region29: #{road_detector_forward.1} parent=1 // pred_fallthru
      _
    // Predicated region
    $region30: #{road_detector_forward.1} parent=1 // pred_check
      _
    $region31: #{road_detector_forward.1} parent=1 // pred_check_branch
      %32 = sbr.rel (0) target = $region33
    $region32: #{road_detector_forward.1} parent=1 // pred_region
      _
    $region33: #{road_detector_forward.1} parent=1 // pred_fallthru
      _
    // Predicated region
    $region34: #{road_detector_forward.1} parent=1 // pred_check
      _
    $region35: #{road_detector_forward.1} parent=1 // pred_check_branch
      %34 = sbr.rel (0) target = $region37
    $region36: #{road_detector_forward.1} parent=1 // pred_region
      _
    $region37: #{road_detector_forward.1} parent=1 // pred_fallthru
      _
    // Predicated region
    $region38: #{road_detector_forward.1} parent=1 // pred_check
      _
    $region39: #{road_detector_forward.1} parent=1 // pred_check_branch
      %36 = sbr.rel (0) target = $region41
    $region40: #{road_detector_forward.1} parent=1 // pred_region
      _
    $region41: #{road_detector_forward.1} parent=1 // pred_fallthru
      _
    // Predicated region
    $region42: #{road_detector_forward.1} parent=1 // pred_check
      _
    $region43: #{road_detector_forward.1} parent=1 // pred_check_branch
      %38 = sbr.rel (0) target = $region45
    $region44: #{road_detector_forward.1} parent=1 // pred_region
      _
    $region45: #{road_detector_forward.1} parent=1 // pred_fallthru
      _
    %v40 = vld [vmem:[%s0] sm:$0xff]
    %v41 = vld [vmem:[%s0 + $0x8] sm:$0xff]
    %v42 = vld [vmem:[%s0 + $0x10] sm:$0xff]
    %v43 = vld [vmem:[%s0 + $0x18] sm:$0xff]
    %v44 = vpack.c.bf16 %v41, %v40
    %v45 = vpack.c.bf16 %v43, %v42
    %v47 = vunpack.c.l.b16 %v44
    %v48 = vunpack.c.h.b16 %v44
    %v49 = vpack.c.b16 %v47, %v47
    %v50 = vpack.c.b16 %v48, %v48
    %vm53 = vcmask 388096
    %54 = vst.msk [vmem:[#allocation2] sm:$0xf] %vm53, %v49
    %vm55 = vcmask 386048
    %56 = vst.msk [vmem:[#allocation2 + $0x8] sm:$0x3] %vm55, %v50
    %vm57 = vsmask.f32 3328
    %vm58 = vsmask.f32 7440
    %vm59 = vmor %vm57, %vm58
    %v61 = vshrl.u32 %v49, 16
    %v63 = vrot.slane %v61, 4
    %v64 = vshll.u32 %v49, 16
    %v66 = vrot.slane %v64, 5
    %v67 = vor.u32 %v63, %v66
    %v68 = vrot.slane %v67, 4
    %v70 = vshll.u32 %v50, 16
    %v72 = vrot.slane %v70, 5
    %v73 = vsel %vm59, %v68, %v72
    %v74 = vshrl.u32 %v50, 16
    %v76 = vrot.slane %v74, 4
    %v77 = vor.u32 %v76, %v72
    %v78 = vrot.slane %v77, 4
    %79 = vrot.lane.b32.xlu0 %v73, 48
    %v80 = vpop.permute.xlu0 %79
    %81 = vrot.lane.b32.xlu0 %v78, 48
    %v82 = vpop.permute.xlu0 %81
    %vm85 = vcmask 781696
    %86 = vst.msk [vmem:[#allocation2] sm:$0xf] %vm85, %v80
    %vm87 = vcmask 779648
    %88 = vst.msk [vmem:[#allocation2 + $0x8] sm:$0x3] %vm87, %v82
    %vm89 = vcmask 1042432
    %vm90 = vcmask 1046532
    %vm91 = vmor %vm89, %vm90
    %v92 = vrot.slane %v49, 5
    %v93 = vrot.slane %v92, 4
    %v94 = vrot.slane %v50, 5
    %v95 = vsel %vm91, %v93, %v94
    %v96 = vrot.slane %v94, 4
    %97 = vrot.lane.b32.xlu0 %v95, 96
    %v98 = vpop.permute.xlu0 %97
    %99 = vrot.lane.b32.xlu0 %v96, 96
    %v100 = vpop.permute.xlu0 %99
    %v101 = vrot.slane %v98, 4
    %v102 = vrot.slane %v100, 4
    %vm103 = vcmask 785408
    %v104 = vsel %vm103, %v101, %v98
    %v105 = vsel %vm103, %v102, %v100
    %vm108 = vcmask 1044224
    %vm109 = vcmask 130052
    %vm110 = vmor %vm109, %vm108
    %111 = vst.msk [vmem:[#allocation2] sm:$0xff] %vm110, %v104
    %vm112 = vcmask 1042176
    %vm113 = vcmask 128004
    %vm114 = vmor %vm113, %vm112
    %115 = vst.msk [vmem:[#allocation2 + $0x8] sm:$0x33] %vm114, %v105
    %vm116 = vsmask.f32 2304
    %vm117 = vsmask.f32 6416
    %vm118 = vmor %vm116, %vm117
    %v119 = vrot.slane %v61, 5
    %v120 = vrot.slane %v64, 6
    %v121 = vor.u32 %v119, %v120
    %v122 = vrot.slane %v121, 4
    %v123 = vrot.slane %v74, 5
    %v124 = vrot.slane %v70, 6
    %v125 = vor.u32 %v123, %v124
    %v126 = vsel %vm118, %v122, %v125
    %v127 = vrot.slane %v125, 4
    %128 = vrot.lane.b32.xlu0 %v126, 16
    %v129 = vpop.permute.xlu0 %128
    %130 = vrot.lane.b32.xlu0 %v127, 16
    %v131 = vpop.permute.xlu0 %130
    %vm134 = vcmask 519296
    %135 = vst.msk [vmem:[#allocation2 + $0x4] sm:$0xf] %vm134, %v129
    %vm136 = vcmask 517248
    %137 = vst.msk [vmem:[#allocation2 + $0xc] sm:$0x3] %vm136, %v131
    %vm138 = vcmask 1041408
    %vm139 = vcmask 1045508
    %vm140 = vmor %vm138, %vm139
    %v141 = vrot.slane %v49, 6
    %v142 = vrot.slane %v141, 4
    %v143 = vrot.slane %v50, 6
    %v144 = vsel %vm140, %v142, %v143
    %v145 = vrot.slane %v143, 4
    %146 = vrot.lane.b32.xlu0 %v144, 64
    %v147 = vpop.permute.xlu0 %146
    %148 = vrot.lane.b32.xlu0 %v145, 64
    %v149 = vpop.permute.xlu0 %148
    %vm152 = vcmask 912896
    %153 = vst.msk [vmem:[#allocation2 + $0x4] sm:$0xf] %vm152, %v147
    %vm154 = vcmask 910848
    %155 = vst.msk [vmem:[#allocation2 + $0xc] sm:$0x3] %vm154, %v149
    %v157 = vunpack.c.l.b16 %v45
    %v158 = vunpack.c.h.b16 %v45
    %v159 = vpack.c.b16 %v157, %v157
    %v160 = vpack.c.b16 %v158, %v158
    %v161 = vrot.slane %v159, 6
    %v162 = vrot.slane %v161, 4
    %v163 = vrot.slane %v160, 6
    %v164 = vsel %vm140, %v162, %v163
    %vm167 = vcmask 388098
    %168 = vst.msk [vmem:[#allocation2 + $0x8] sm:$0xc] %vm167, %v161
    %169 = vst.msk [vmem:[#allocation2 + $0x10] sm:$0xf] %vm53, %v164
    %vm170 = vsmask.f32 1280
    %vm171 = vsmask.f32 5392
    %vm172 = vmor %vm170, %vm171
    %v174 = vshrl.u32 %v159, 16
    %v176 = vrot.slane %v174, 6
    %v177 = vshll.u32 %v159, 16
    %v179 = vrot.slane %v177, 7
    %v180 = vor.u32 %v176, %v179
    %v181 = vrot.slane %v180, 4
    %v183 = vshrl.u32 %v160, 16
    %v185 = vrot.slane %v183, 6
    %v186 = vshll.u32 %v160, 16
    %v188 = vrot.slane %v186, 7
    %v189 = vor.u32 %v185, %v188
    %v190 = vsel %vm172, %v181, %v189
    %191 = vrot.lane.b32.xlu0 %v180, 48
    %v192 = vpop.permute.xlu0 %191
    %193 = vrot.lane.b32.xlu0 %v190, 48
    %v194 = vpop.permute.xlu0 %193
    %vm197 = vcmask 781698
    %198 = vst.msk [vmem:[#allocation2 + $0x8] sm:$0xc] %vm197, %v192
    %199 = vst.msk [vmem:[#allocation2 + $0x10] sm:$0xf] %vm85, %v194
    %vm200 = vcmask 1040384
    %vm201 = vcmask 1044484
    %vm202 = vmor %vm200, %vm201
    %v203 = vrot.slane %v159, 7
    %v204 = vrot.slane %v203, 4
    %v205 = vrot.slane %v160, 7
    %v206 = vsel %vm202, %v204, %v205
    %207 = vrot.lane.b32.xlu0 %v203, 96
    %v208 = vpop.permute.xlu0 %207
    %209 = vrot.lane.b32.xlu0 %v206, 96
    %v210 = vpop.permute.xlu0 %209
    %v211 = vrot.slane %v208, 4
    %v212 = vrot.slane %v210, 4
    %v213 = vsel %vm103, %v211, %v208
    %v214 = vsel %vm103, %v212, %v210
    %vm217 = vcmask 1044226
    %vm218 = vcmask 130054
    %vm219 = vmor %vm218, %vm217
    %220 = vst.msk [vmem:[#allocation2 + $0x8] sm:$0xcc] %vm219, %v213
    %221 = vst.msk [vmem:[#allocation2 + $0x10] sm:$0xff] %vm110, %v214
    %vm222 = vsmask.f32 256
    %vm223 = vsmask.f32 4368
    %vm224 = vmor %vm222, %vm223
    %v225 = vrot.slane %v174, 7
    %v226 = vor.u32 %v225, %v177
    %v227 = vrot.slane %v225, 4
    %v228 = vrot.slane %v183, 7
    %v229 = vor.u32 %v228, %v186
    %v230 = vsel %vm224, %v227, %v229
    %231 = vrot.lane.b32.xlu0 %v226, 16
    %v232 = vpop.permute.xlu0 %231
    %233 = vrot.lane.b32.xlu0 %v230, 16
    %v234 = vpop.permute.xlu0 %233
    %vm237 = vcmask 519298
    %238 = vst.msk [vmem:[#allocation2 + $0xc] sm:$0xc] %vm237, %v232
    %239 = vst.msk [vmem:[#allocation2 + $0x14] sm:$0xf] %vm134, %v234
    %240 = vrot.lane.b32.xlu0 %v159, 64
    %v241 = vpop.permute.xlu0 %240
    %242 = vrot.lane.b32.xlu0 %v160, 64
    %v243 = vpop.permute.xlu0 %242
    %vm246 = vcmask 912898
    %247 = vst.msk [vmem:[#allocation2 + $0xc] sm:$0xc] %vm246, %v241
    %248 = vst.msk [vmem:[#allocation2 + $0x14] sm:$0xf] %vm152, %v243
    %v249 = vld [vmem:[#allocation2] sm:$0xff]
    %v250 = vld [vmem:[#allocation2 + $0x8] sm:$0xff]
    %v251 = vld [vmem:[#allocation2 + $0x10] sm:$0xff]
    %v252 = vld [vmem:[%s1] sm:$0xff]
    %v253 = vld [vmem:[%s1 + $0x8] sm:$0xff]
    %v254 = vld [vmem:[%s1 + $0x10] sm:$0xff]
    %v255 = vld [vmem:[%s1 + $0x18] sm:$0xff]
    %v256 = vld [vmem:[%s1 + $0x20] sm:$0xff]
    %v257 = vld [vmem:[%s1 + $0x28] sm:$0xff]
    %v258 = vld [vmem:[%s1 + $0x30] sm:$0xff]
    %v259 = vld [vmem:[%s1 + $0x38] sm:$0xff]
    %v260 = vld [vmem:[%s1 + $0x40] sm:$0xff]
    %v261 = vld [vmem:[%s1 + $0x48] sm:$0xff]
    %v262 = vld [vmem:[%s1 + $0x50] sm:$0xff]
    %v263 = vld [vmem:[%s1 + $0x58] sm:$0xff]
    %v264 = vld [vmem:[%s1 + $0x60] sm:$0xff]
    %v265 = vld [vmem:[%s1 + $0x68] sm:$0xff]
    %v266 = vld [vmem:[%s1 + $0x70] sm:$0xff]
    %v267 = vld [vmem:[%s1 + $0x78] sm:$0xff]
    %v268 = vld [vmem:[%s1 + $0x80] sm:$0xff]
    %v269 = vld [vmem:[%s1 + $0x88] sm:$0xff]
    %v270 = vld [vmem:[%s1 + $0x90] sm:$0xff]
    %v271 = vld [vmem:[%s1 + $0x98] sm:$0xff]
    %v272 = vld [vmem:[%s1 + $0xa0] sm:$0xff]
    %v273 = vld [vmem:[%s1 + $0xa8] sm:$0xff]
    %v274 = vld [vmem:[%s1 + $0xb0] sm:$0xff]
    %v275 = vld [vmem:[%s1 + $0xb8] sm:$0xff]
    %v276 = vld [vmem:[%s1 + $0xc0] sm:$0xff]
    %v277 = vld [vmem:[%s1 + $0xc8] sm:$0xff]
    %v278 = vld [vmem:[%s1 + $0xd0] sm:$0xff]
    %v279 = vld [vmem:[%s1 + $0xd8] sm:$0xff]
    %v280 = vld [vmem:[%s1 + $0xe0] sm:$0xff]
    %v281 = vld [vmem:[%s1 + $0xe8] sm:$0xff]
    %v282 = vld [vmem:[%s2] sm:$0x3]
    %v284 = vlaneseq
    %v285 = vshrl.u32 %v284, 7
    %v286 = vsub.s32 0, %v285
    %v287 = vrot.slane %v282, %v286
    %v288 = vlaneseq
    %v289 = vshrl.u32 %v288, 7
    %v290 = vsub.s32 1, %v289
    %v291 = vrot.slane %v282, %v290
    %v297 = vunpack.c.l.b16 %v249
    %v298 = vunpack.c.h.b16 %v249
    %v299 = vunpack.c.l.b16 %v250
    %v300 = vunpack.c.h.b16 %v250
    %v301 = vunpack.c.l.b16 %v251
    %v302 = vunpack.c.h.b16 %v251
    %v303 = vpack.c.b16 %v299, %v297
    %v304 = vpack.c.b16 %v300, %v298
    %v305 = vpack.c.b16 %v301, %v301
    %v306 = vpack.c.b16 %v302, %v302
    %v339 = vunpack.c.l.b16 %v252
    %v340 = vunpack.c.h.b16 %v252
    %v341 = vunpack.c.l.b16 %v253
    %v342 = vunpack.c.h.b16 %v253
    %v343 = vunpack.c.l.b16 %v254
    %v344 = vunpack.c.h.b16 %v254
    %v345 = vunpack.c.l.b16 %v255
    %v346 = vunpack.c.h.b16 %v255
    %v347 = vunpack.c.l.b16 %v256
    %v348 = vunpack.c.h.b16 %v256
    %v349 = vunpack.c.l.b16 %v257
    %v350 = vunpack.c.h.b16 %v257
    %v351 = vunpack.c.l.b16 %v258
    %v352 = vunpack.c.h.b16 %v258
    %v353 = vunpack.c.l.b16 %v259
    %v354 = vunpack.c.h.b16 %v259
    %v355 = vunpack.c.l.b16 %v260
    %v356 = vunpack.c.h.b16 %v260
    %v357 = vunpack.c.l.b16 %v261
    %v358 = vunpack.c.h.b16 %v261
    %v359 = vunpack.c.l.b16 %v262
    %v360 = vunpack.c.h.b16 %v262
    %v361 = vunpack.c.l.b16 %v263
    %v362 = vunpack.c.h.b16 %v263
    %v363 = vunpack.c.l.b16 %v264
    %v364 = vunpack.c.h.b16 %v264
    %v365 = vunpack.c.l.b16 %v265
    %v366 = vunpack.c.h.b16 %v265
    %v367 = vunpack.c.l.b16 %v266
    %v368 = vunpack.c.h.b16 %v266
    %v369 = vunpack.c.l.b16 %v267
    %v370 = vunpack.c.h.b16 %v267
    %v371 = vunpack.c.l.b16 %v268
    %v372 = vunpack.c.h.b16 %v268
    %v373 = vunpack.c.l.b16 %v269
    %v374 = vunpack.c.h.b16 %v269
    %v375 = vunpack.c.l.b16 %v270
    %v376 = vunpack.c.h.b16 %v270
    %v377 = vunpack.c.l.b16 %v271
    %v378 = vunpack.c.h.b16 %v271
    %v379 = vunpack.c.l.b16 %v272
    %v380 = vunpack.c.h.b16 %v272
    %v381 = vunpack.c.l.b16 %v273
    %v382 = vunpack.c.h.b16 %v273
    %v383 = vunpack.c.l.b16 %v274
    %v384 = vunpack.c.h.b16 %v274
    %v385 = vunpack.c.l.b16 %v275
    %v386 = vunpack.c.h.b16 %v275
    %v387 = vunpack.c.l.b16 %v276
    %v388 = vunpack.c.h.b16 %v276
    %v389 = vunpack.c.l.b16 %v277
    %v390 = vunpack.c.h.b16 %v277
    %v391 = vunpack.c.l.b16 %v278
    %v392 = vunpack.c.h.b16 %v278
    %v393 = vunpack.c.l.b16 %v279
    %v394 = vunpack.c.h.b16 %v279
    %v395 = vunpack.c.l.b16 %v280
    %v396 = vunpack.c.h.b16 %v280
    %v397 = vunpack.c.l.b16 %v281
    %v398 = vunpack.c.h.b16 %v281
    %v399 = vpack.c.b16 %v341, %v339
    %v400 = vpack.c.b16 %v342, %v340
    %v401 = vpack.c.b16 %v345, %v343
    %v402 = vpack.c.b16 %v346, %v344
    %v403 = vpack.c.b16 %v349, %v347
    %v404 = vpack.c.b16 %v350, %v348
    %v405 = vpack.c.b16 %v353, %v351
    %v406 = vpack.c.b16 %v354, %v352
    %v407 = vpack.c.b16 %v357, %v355
    %v408 = vpack.c.b16 %v358, %v356
    %v409 = vpack.c.b16 %v361, %v359
    %v410 = vpack.c.b16 %v362, %v360
    %v411 = vpack.c.b16 %v365, %v363
    %v412 = vpack.c.b16 %v366, %v364
    %v413 = vpack.c.b16 %v369, %v367
    %v414 = vpack.c.b16 %v370, %v368
    %v415 = vpack.c.b16 %v373, %v371
    %v416 = vpack.c.b16 %v374, %v372
    %v417 = vpack.c.b16 %v377, %v375
    %v418 = vpack.c.b16 %v378, %v376
    %v419 = vpack.c.b16 %v381, %v379
    %v420 = vpack.c.b16 %v382, %v380
    %v421 = vpack.c.b16 %v385, %v383
    %v422 = vpack.c.b16 %v386, %v384
    %v423 = vpack.c.b16 %v389, %v387
    %v424 = vpack.c.b16 %v390, %v388
    %v425 = vpack.c.b16 %v393, %v391
    %v426 = vpack.c.b16 %v394, %v392
    %v427 = vpack.c.b16 %v397, %v395
    %v428 = vpack.c.b16 %v398, %v396
    %vm459 = vcmask 916480
    %v461 = vsel %vm459, %v304, 0
    %v464 = vsel %vm459, %v306, 0
    %466 = vmatprep.subr.bf16.mxu0 %v400
    %467 = vmatpush1.bf16.msra.mxu0 %v399
    %468 = vmatprep.subr.bf16.mxu0 %v402
    %469 = vmatpush1.bf16.msra.mxu0 %v401
    %470 = vmatprep.subr.bf16.mxu0 %v404
    %471 = vmatpush1.bf16.msra.mxu0 %v403
    %472 = vmatprep.subr.bf16.mxu0 %v406
    %473 = vmatpush1.bf16.msra.mxu0 %v405
    %474 = vmatprep.subr.bf16.mxu0 %v408
    %475 = vmatpush1.bf16.msra.mxu0 %v407
    %476 = vmatprep.subr.bf16.mxu0 %v410
    %477 = vmatpush1.bf16.msra.mxu0 %v409
    %478 = vmatprep.subr.bf16.mxu0 %v412
    %479 = vmatpush1.bf16.msra.mxu0 %v411
    %480 = vmatprep.subr.bf16.mxu0 %v414
    %481 = vmatpush1.bf16.msra.mxu0 %v413
    %482 = vmatprep.subr.bf16.mxu0 %v416
    %483 = vmatpush1.bf16.msra.mxu0 %v415
    %484 = vmatprep.subr.bf16.mxu0 %v418
    %485 = vmatpush1.bf16.msra.mxu0 %v417
    %486 = vmatprep.subr.bf16.mxu0 %v420
    %487 = vmatpush1.bf16.msra.mxu0 %v419
    %488 = vmatprep.subr.bf16.mxu0 %v422
    %489 = vmatpush1.bf16.msra.mxu0 %v421
    %490 = vmatprep.subr.bf16.mxu0 %v424
    %491 = vmatpush1.bf16.msra.mxu0 %v423
    %492 = vmatprep.subr.bf16.mxu0 %v426
    %493 = vmatpush1.bf16.msra.mxu0 %v425
    %494 = vmatprep.subr.bf16.mxu0 %v428
    %495 = vmatpush1.bf16.msra.mxu0 %v427
    %496 = vmatprep.subr.bf16.mxu0 0
    %497 = vmatpush1.bf16.msra.mxu0 0
    %498 = vmatprep.mubr.bf16.mxu0 %v461
    %499 = vmatmul.mubr.bf16.gmra.mrb[0].mxu0 %v303
    %v500 = vpop.f32.mrb[0].mxu0
    %v501 = vadd.f32 %v287, %v500
    %v502 = vpop.f32.mrb[0].mxu0
    %v503 = vadd.f32 %v291, %v502
    %v504 = vpop.f32.mrb[0].mxu0
    %v505 = vadd.f32 %v287, %v504
    %v506 = vpop.f32.mrb[0].mxu0
    %v507 = vadd.f32 %v291, %v506
    %508 = vmatprep.mubr.bf16.mxu0 %v464
    %509 = vmatmul.mubr.bf16.gmra.mrb[0].mxu0 %v305
    %v510 = vpop.f32.mrb[0].mxu0
    %v511 = vadd.f32 %v287, %v510
    %v512 = vpop.f32.mrb[0].mxu0
    %v513 = vadd.f32 %v291, %v512
    %v514 = vpop.f32.mrb[0].mxu0
    %v515 = vpop.f32.mrb[0].mxu0
    %516 = vdwg.mxu0
    %v517 = vmax.f32 %v501, 0.0
    %v518 = vmax.f32 %v503, 0.0
    %v519 = vmax.f32 %v505, 0.0
    %v520 = vmax.f32 %v507, 0.0
    %v521 = vmax.f32 %v511, 0.0
    %v522 = vmax.f32 %v513, 0.0
    %v523 = vpack.c.bf16 %v519, %v517
    %v524 = vpack.c.bf16 %v520, %v518
    %v525 = vpack.c.bf16 %v521, %v521
    %v526 = vpack.c.bf16 %v522, %v522
    %527 = vst [vmem:[#allocation3] sm:$0xf] %v523
    %vm528 = vcmask 519168
    %529 = vst.msk [vmem:[#allocation3 + $0x8] sm:$0xf] %vm528, %v524
    %v531 = vshrl.u32 %v523, 16
    %v533 = vshll.u32 %v523, 16
    %v535 = vrot.slane %v533, 1
    %v536 = vor.u32 %v531, %v535
    %v538 = vshrl.u32 %v524, 16
    %v540 = vshll.u32 %v524, 16
    %v542 = vrot.slane %v540, 1
    %v543 = vor.u32 %v538, %v542
    %544 = vrot.lane.b32.xlu0 %v536, 64
    %v545 = vpop.permute.xlu0 %544
    %546 = vrot.lane.b32.xlu0 %v543, 64
    %v547 = vpop.permute.xlu0 %546
    %vm548 = vcmask 523264
    %v549 = vsel %vm548, %v545, %v547
    %vm552 = vcmask 1043968
    %553 = vst.msk [vmem:[#allocation3 + $0x8] sm:$0xf] %vm552, %v545
    %554 = vst [vmem:[#allocation3 + $0x10] sm:$0xf] %v549
    %v557 = vrot.slane %v523, 1
    %v558 = vrot.slane %v524, 1
    %561 = vst [vmem:[#allocation3 + $0x18] sm:$0xf] %v557
    %562 = vst.msk [vmem:[#allocation3 + $0x20] sm:$0xf] %vm528, %v558
    %v563 = vrot.slane %v531, 1
    %v564 = vrot.slane %v533, 2
    %v565 = vor.u32 %v563, %v564
    %v566 = vrot.slane %v538, 1
    %v567 = vrot.slane %v540, 2
    %v568 = vor.u32 %v566, %v567
    %569 = vrot.lane.b32.xlu0 %v565, 64
    %v570 = vpop.permute.xlu0 %569
    %571 = vrot.lane.b32.xlu0 %v568, 64
    %v572 = vpop.permute.xlu0 %571
    %v573 = vsel %vm548, %v570, %v572
    %576 = vst.msk [vmem:[#allocation3 + $0x20] sm:$0xf] %vm552, %v570
    %577 = vst [vmem:[#allocation3 + $0x28] sm:$0xf] %v573
    %v578 = vrot.slane %v523, 2
    %v579 = vrot.slane %v524, 2
    %582 = vst [vmem:[#allocation3 + $0x30] sm:$0xf] %v578
    %583 = vst.msk [vmem:[#allocation3 + $0x38] sm:$0xf] %vm528, %v579
    %vm586 = vcmask 1045504
    %v587 = vrot.slane %v525, 2
    %v588 = vsel %vm586, %v578, %v587
    %v589 = vrot.slane %v526, 2
    %v590 = vsel %vm586, %v579, %v589
    %593 = vst [vmem:[#allocation3] sm:$0xf0] %v588
    %vm594 = vcmask 523268
    %595 = vst.msk [vmem:[#allocation3 + $0x8] sm:$0xf0] %vm594, %v590
    %vm596 = vsmask.f32 5376
    %v597 = vrot.slane %v531, 2
    %v598 = vrot.slane %v533, 3
    %v599 = vor.u32 %v597, %v598
    %v601 = vshrl.u32 %v525, 16
    %v603 = vrot.slane %v601, 2
    %v604 = vshll.u32 %v525, 16
    %v606 = vrot.slane %v604, 3
    %v607 = vor.u32 %v603, %v606
    %v608 = vsel %vm596, %v599, %v607
    %v609 = vrot.slane %v538, 2
    %v610 = vrot.slane %v540, 3
    %v611 = vor.u32 %v609, %v610
    %v613 = vshrl.u32 %v526, 16
    %v615 = vrot.slane %v613, 2
    %v616 = vshll.u32 %v526, 16
    %v618 = vrot.slane %v616, 3
    %v619 = vor.u32 %v615, %v618
    %v620 = vsel %vm596, %v611, %v619
    %621 = vrot.lane.b32.xlu0 %v608, 64
    %v622 = vpop.permute.xlu0 %621
    %623 = vrot.lane.b32.xlu0 %v620, 64
    %v624 = vpop.permute.xlu0 %623
    %v625 = vsel %vm548, %v622, %v624
    %vm628 = vcmask 1048068
    %629 = vst.msk [vmem:[#allocation3 + $0x8] sm:$0xf0] %vm628, %v622
    %630 = vst [vmem:[#allocation3 + $0x10] sm:$0xf0] %v625
    %vm631 = vcmask 1044480
    %v632 = vrot.slane %v523, 3
    %v633 = vrot.slane %v525, 3
    %v634 = vsel %vm631, %v632, %v633
    %v635 = vrot.slane %v524, 3
    %v636 = vrot.slane %v526, 3
    %v637 = vsel %vm631, %v635, %v636
    %640 = vst [vmem:[#allocation3 + $0x18] sm:$0xf0] %v634
    %641 = vst.msk [vmem:[#allocation3 + $0x20] sm:$0xf0] %vm594, %v637
    %vm642 = vsmask.f32 4352
    %v643 = vrot.slane %v531, 3
    %v644 = vrot.slane %v601, 3
    %v645 = vrot.slane %v604, 4
    %v646 = vor.u32 %v644, %v645
    %v647 = vsel %vm642, %v643, %v646
    %v648 = vrot.slane %v538, 3
    %v649 = vrot.slane %v613, 3
    %v650 = vrot.slane %v616, 4
    %v651 = vor.u32 %v649, %v650
    %v652 = vsel %vm642, %v648, %v651
    %653 = vrot.lane.b32.xlu0 %v647, 64
    %v654 = vpop.permute.xlu0 %653
    %655 = vrot.lane.b32.xlu0 %v652, 64
    %v656 = vpop.permute.xlu0 %655
    %v657 = vsel %vm548, %v654, %v656
    %660 = vst.msk [vmem:[#allocation3 + $0x20] sm:$0xf0] %vm628, %v654
    %661 = vst [vmem:[#allocation3 + $0x28] sm:$0xf0] %v657
    %v662 = vrot.slane %v525, 4
    %v663 = vrot.slane %v526, 4
    %666 = vst [vmem:[#allocation3 + $0x30] sm:$0xf0] %v662
    %667 = vst.msk [vmem:[#allocation3 + $0x38] sm:$0xf0] %vm594, %v663
    %v668 = vld [vmem:[#allocation3] sm:$0xff]
    %v669 = vld [vmem:[#allocation3 + $0x8] sm:$0xff]
    %v670 = vld [vmem:[#allocation3 + $0x10] sm:$0xff]
    %v671 = vld [vmem:[#allocation3 + $0x18] sm:$0xff]
    %v672 = vld [vmem:[#allocation3 + $0x20] sm:$0xff]
    %v673 = vld [vmem:[#allocation3 + $0x28] sm:$0xff]
    %v674 = vld [vmem:[#allocation3 + $0x30] sm:$0xff]
    %v675 = vld [vmem:[#allocation3 + $0x38] sm:$0xff]
    %v676 = vld [vmem:[%s3] sm:$0xf]
    %v677 = vld [vmem:[%s3 + $0x4] sm:$0xf]
    %v678 = vld [vmem:[%s3 + $0x8] sm:$0xf]
    %v679 = vld [vmem:[%s3 + $0xc] sm:$0xf]
    %v680 = vld [vmem:[%s3 + $0x10] sm:$0xf]
    %v681 = vld [vmem:[%s3 + $0x14] sm:$0xf]
    %v682 = vld [vmem:[%s3 + $0x18] sm:$0xf]
    %v683 = vld [vmem:[%s3 + $0x1c] sm:$0xf]
    %v684 = vld [vmem:[%s3 + $0x20] sm:$0xf]
    %v685 = vld [vmem:[%s3 + $0x24] sm:$0xf]
    %v686 = vld [vmem:[%s3 + $0x28] sm:$0xf]
    %v687 = vld [vmem:[%s3 + $0x2c] sm:$0xf]
    %v688 = vld [vmem:[%s3 + $0x30] sm:$0xf]
    %v689 = vld [vmem:[%s3 + $0x34] sm:$0xf]
    %v690 = vld [vmem:[%s3 + $0x38] sm:$0xf]
    %v691 = vld [vmem:[%s3 + $0x3c] sm:$0xf]
    %v692 = vld [vmem:[%s3 + $0x40] sm:$0xf]
    %v693 = vld [vmem:[%s3 + $0x44] sm:$0xf]
    %v694 = vld [vmem:[%s3 + $0x48] sm:$0xf]
    %v695 = vld [vmem:[%s3 + $0x4c] sm:$0xf]
    %v696 = vld [vmem:[%s3 + $0x50] sm:$0xf]
    %v697 = vld [vmem:[%s3 + $0x54] sm:$0xf]
    %v698 = vld [vmem:[%s3 + $0x58] sm:$0xf]
    %v699 = vld [vmem:[%s3 + $0x5c] sm:$0xf]
    %v700 = vld [vmem:[%s3 + $0x60] sm:$0xf]
    %v701 = vld [vmem:[%s3 + $0x64] sm:$0xf]
    %v702 = vld [vmem:[%s3 + $0x68] sm:$0xf]
    %v703 = vld [vmem:[%s3 + $0x6c] sm:$0xf]
    %v704 = vld [vmem:[%s3 + $0x70] sm:$0xf]
    %v705 = vld [vmem:[%s3 + $0x74] sm:$0xf]
    %v706 = vld [vmem:[%s3 + $0x78] sm:$0xf]
    %v707 = vld [vmem:[%s3 + $0x7c] sm:$0xf]
    %v708 = vld [vmem:[%s3 + $0x80] sm:$0xf]
    %v709 = vld [vmem:[%s3 + $0x84] sm:$0xf]
    %v710 = vld [vmem:[%s3 + $0x88] sm:$0xf]
    %v711 = vld [vmem:[%s3 + $0x8c] sm:$0xf]
    %v712 = vld [vmem:[%s3 + $0x90] sm:$0xf]
    %v713 = vld [vmem:[%s3 + $0x94] sm:$0xf]
    %v714 = vld [vmem:[%s3 + $0x98] sm:$0xf]
    %v715 = vld [vmem:[%s3 + $0x9c] sm:$0xf]
    %v716 = vld [vmem:[%s3 + $0xa0] sm:$0xf]
    %v717 = vld [vmem:[%s3 + $0xa4] sm:$0xf]
    %v718 = vld [vmem:[%s3 + $0xa8] sm:$0xf]
    %v719 = vld [vmem:[%s3 + $0xac] sm:$0xf]
    %v720 = vld [vmem:[%s3 + $0xb0] sm:$0xf]
    %v721 = vld [vmem:[%s3 + $0xb4] sm:$0xf]
    %v722 = vld [vmem:[%s3 + $0xb8] sm:$0xf]
    %v723 = vld [vmem:[%s3 + $0xbc] sm:$0xf]
    %v724 = vld [vmem:[%s3 + $0xc0] sm:$0xf]
    %v725 = vld [vmem:[%s3 + $0xc4] sm:$0xf]
    %v726 = vld [vmem:[%s3 + $0xc8] sm:$0xf]
    %v727 = vld [vmem:[%s3 + $0xcc] sm:$0xf]
    %v728 = vld [vmem:[%s3 + $0xd0] sm:$0xf]
    %v729 = vld [vmem:[%s3 + $0xd4] sm:$0xf]
    %v730 = vld [vmem:[%s3 + $0xd8] sm:$0xf]
    %v731 = vld [vmem:[%s3 + $0xdc] sm:$0xf]
    %v732 = vld [vmem:[%s3 + $0xe0] sm:$0xf]
    %v733 = vld [vmem:[%s3 + $0xe4] sm:$0xf]
    %v734 = vld [vmem:[%s3 + $0xe8] sm:$0xf]
    %v735 = vld [vmem:[%s3 + $0xec] sm:$0xf]
    %v736 = vld [vmem:[%s3 + $0xf0] sm:$0xf]
    %v737 = vld [vmem:[%s3 + $0xf4] sm:$0xf]
    %v738 = vld [vmem:[%s3 + $0xf8] sm:$0xf]
    %v739 = vld [vmem:[%s3 + $0xfc] sm:$0xf]
    %v740 = vld [vmem:[%s3 + $0x100] sm:$0xf]
    %v741 = vld [vmem:[%s3 + $0x104] sm:$0xf]
    %v742 = vld [vmem:[%s3 + $0x108] sm:$0xf]
    %v743 = vld [vmem:[%s3 + $0x10c] sm:$0xf]
    %v744 = vld [vmem:[%s3 + $0x110] sm:$0xf]
    %v745 = vld [vmem:[%s3 + $0x114] sm:$0xf]
    %v746 = vld [vmem:[%s3 + $0x118] sm:$0xf]
    %v747 = vld [vmem:[%s3 + $0x11c] sm:$0xf]
    %v748 = vld [vmem:[%s3 + $0x120] sm:$0xf]
    %v749 = vld [vmem:[%s3 + $0x124] sm:$0xf]
    %v750 = vld [vmem:[%s3 + $0x128] sm:$0xf]
    %v751 = vld [vmem:[%s3 + $0x12c] sm:$0xf]
    %v752 = vld [vmem:[%s3 + $0x130] sm:$0xf]
    %v753 = vld [vmem:[%s3 + $0x134] sm:$0xf]
    %v754 = vld [vmem:[%s3 + $0x138] sm:$0xf]
    %v755 = vld [vmem:[%s3 + $0x13c] sm:$0xf]
    %v756 = vld [vmem:[%s3 + $0x140] sm:$0xf]
    %v757 = vld [vmem:[%s3 + $0x144] sm:$0xf]
    %v758 = vld [vmem:[%s3 + $0x148] sm:$0xf]
    %v759 = vld [vmem:[%s3 + $0x14c] sm:$0xf]
    %v760 = vld [vmem:[%s3 + $0x150] sm:$0xf]
    %v761 = vld [vmem:[%s3 + $0x154] sm:$0xf]
    %v762 = vld [vmem:[%s3 + $0x158] sm:$0xf]
    %v763 = vld [vmem:[%s3 + $0x15c] sm:$0xf]
    %v764 = vld [vmem:[%s3 + $0x160] sm:$0xf]
    %v765 = vld [vmem:[%s3 + $0x164] sm:$0xf]
    %v766 = vld [vmem:[%s3 + $0x168] sm:$0xf]
    %v767 = vld [vmem:[%s3 + $0x16c] sm:$0xf]
    %v768 = vld [vmem:[%s3 + $0x170] sm:$0xf]
    %v769 = vld [vmem:[%s3 + $0x174] sm:$0xf]
    %v770 = vld [vmem:[%s3 + $0x178] sm:$0xf]
    %v771 = vld [vmem:[%s3 + $0x17c] sm:$0xf]
    %v772 = vld [vmem:[%s3 + $0x180] sm:$0xf]
    %v773 = vld [vmem:[%s3 + $0x184] sm:$0xf]
    %v774 = vld [vmem:[%s3 + $0x188] sm:$0xf]
    %v775 = vld [vmem:[%s3 + $0x18c] sm:$0xf]
    %v776 = vld [vmem:[%s3 + $0x190] sm:$0xf]
    %v777 = vld [vmem:[%s3 + $0x194] sm:$0xf]
    %v778 = vld [vmem:[%s3 + $0x198] sm:$0xf]
    %v779 = vld [vmem:[%s3 + $0x19c] sm:$0xf]
    %v780 = vld [vmem:[%s3 + $0x1a0] sm:$0xf]
    %v781 = vld [vmem:[%s3 + $0x1a4] sm:$0xf]
    %v782 = vld [vmem:[%s3 + $0x1a8] sm:$0xf]
    %v783 = vld [vmem:[%s3 + $0x1ac] sm:$0xf]
    %v784 = vld [vmem:[%s3 + $0x1b0] sm:$0xf]
    %v785 = vld [vmem:[%s3 + $0x1b4] sm:$0xf]
    %v786 = vld [vmem:[%s3 + $0x1b8] sm:$0xf]
    %v787 = vld [vmem:[%s3 + $0x1bc] sm:$0xf]
    %v788 = vld [vmem:[%s3 + $0x1c0] sm:$0xf]
    %v789 = vld [vmem:[%s3 + $0x1c4] sm:$0xf]
    %v790 = vld [vmem:[%s3 + $0x1c8] sm:$0xf]
    %v791 = vld [vmem:[%s3 + $0x1cc] sm:$0xf]
    %v792 = vld [vmem:[%s3 + $0x1d0] sm:$0xf]
    %v793 = vld [vmem:[%s3 + $0x1d4] sm:$0xf]
    %v794 = vld [vmem:[%s3 + $0x1d8] sm:$0xf]
    %v795 = vld [vmem:[%s3 + $0x1dc] sm:$0xf]
    %v796 = vld [vmem:[%s4] sm:$0x1]
    %v798 = vlaneseq
    %v799 = vshrl.u32 %v798, 7
    %v800 = vsub.s32 0, %v799
    %v801 = vrot.slane %v796, %v800
    %v923 = vunpack.c.l.b16 %v676
    %v924 = vunpack.c.l.b16 %v677
    %v925 = vunpack.c.l.b16 %v678
    %v926 = vunpack.c.l.b16 %v679
    %v927 = vunpack.c.l.b16 %v680
    %v928 = vunpack.c.l.b16 %v681
    %v929 = vunpack.c.l.b16 %v682
    %v930 = vunpack.c.l.b16 %v683
    %v931 = vunpack.c.l.b16 %v684
    %v932 = vunpack.c.l.b16 %v685
    %v933 = vunpack.c.l.b16 %v686
    %v934 = vunpack.c.l.b16 %v687
    %v935 = vunpack.c.l.b16 %v688
    %v936 = vunpack.c.l.b16 %v689
    %v937 = vunpack.c.l.b16 %v690
    %v938 = vunpack.c.l.b16 %v691
    %v939 = vunpack.c.l.b16 %v692
    %v940 = vunpack.c.l.b16 %v693
    %v941 = vunpack.c.l.b16 %v694
    %v942 = vunpack.c.l.b16 %v695
    %v943 = vunpack.c.l.b16 %v696
    %v944 = vunpack.c.l.b16 %v697
    %v945 = vunpack.c.l.b16 %v698
    %v946 = vunpack.c.l.b16 %v699
    %v947 = vunpack.c.l.b16 %v700
    %v948 = vunpack.c.l.b16 %v701
    %v949 = vunpack.c.l.b16 %v702
    %v950 = vunpack.c.l.b16 %v703
    %v951 = vunpack.c.l.b16 %v704
    %v952 = vunpack.c.l.b16 %v705
    %v953 = vunpack.c.l.b16 %v706
    %v954 = vunpack.c.l.b16 %v707
    %v955 = vunpack.c.l.b16 %v708
    %v956 = vunpack.c.l.b16 %v709
    %v957 = vunpack.c.l.b16 %v710
    %v958 = vunpack.c.l.b16 %v711
    %v959 = vunpack.c.l.b16 %v712
    %v960 = vunpack.c.l.b16 %v713
    %v961 = vunpack.c.l.b16 %v714
    %v962 = vunpack.c.l.b16 %v715
    %v963 = vunpack.c.l.b16 %v716
    %v964 = vunpack.c.l.b16 %v717
    %v965 = vunpack.c.l.b16 %v718
    %v966 = vunpack.c.l.b16 %v719
    %v967 = vunpack.c.l.b16 %v720
    %v968 = vunpack.c.l.b16 %v721
    %v969 = vunpack.c.l.b16 %v722
    %v970 = vunpack.c.l.b16 %v723
    %v971 = vunpack.c.l.b16 %v724
    %v972 = vunpack.c.l.b16 %v725
    %v973 = vunpack.c.l.b16 %v726
    %v974 = vunpack.c.l.b16 %v727
    %v975 = vunpack.c.l.b16 %v728
    %v976 = vunpack.c.l.b16 %v729
    %v977 = vunpack.c.l.b16 %v730
    %v978 = vunpack.c.l.b16 %v731
    %v979 = vunpack.c.l.b16 %v732
    %v980 = vunpack.c.l.b16 %v733
    %v981 = vunpack.c.l.b16 %v734
    %v982 = vunpack.c.l.b16 %v735
    %v983 = vunpack.c.l.b16 %v736
    %v984 = vunpack.c.l.b16 %v737
    %v985 = vunpack.c.l.b16 %v738
    %v986 = vunpack.c.l.b16 %v739
    %v987 = vunpack.c.l.b16 %v740
    %v988 = vunpack.c.l.b16 %v741
    %v989 = vunpack.c.l.b16 %v742
    %v990 = vunpack.c.l.b16 %v743
    %v991 = vunpack.c.l.b16 %v744
    %v992 = vunpack.c.l.b16 %v745
    %v993 = vunpack.c.l.b16 %v746
    %v994 = vunpack.c.l.b16 %v747
    %v995 = vunpack.c.l.b16 %v748
    %v996 = vunpack.c.l.b16 %v749
    %v997 = vunpack.c.l.b16 %v750
    %v998 = vunpack.c.l.b16 %v751
    %v999 = vunpack.c.l.b16 %v752
    %v1000 = vunpack.c.l.b16 %v753
    %v1001 = vunpack.c.l.b16 %v754
    %v1002 = vunpack.c.l.b16 %v755
    %v1003 = vunpack.c.l.b16 %v756
    %v1004 = vunpack.c.l.b16 %v757
    %v1005 = vunpack.c.l.b16 %v758
    %v1006 = vunpack.c.l.b16 %v759
    %v1007 = vunpack.c.l.b16 %v760
    %v1008 = vunpack.c.l.b16 %v761
    %v1009 = vunpack.c.l.b16 %v762
    %v1010 = vunpack.c.l.b16 %v763
    %v1011 = vunpack.c.l.b16 %v764
    %v1012 = vunpack.c.l.b16 %v765
    %v1013 = vunpack.c.l.b16 %v766
    %v1014 = vunpack.c.l.b16 %v767
    %v1015 = vunpack.c.l.b16 %v768
    %v1016 = vunpack.c.l.b16 %v769
    %v1017 = vunpack.c.l.b16 %v770
    %v1018 = vunpack.c.l.b16 %v771
    %v1019 = vunpack.c.l.b16 %v772
    %v1020 = vunpack.c.l.b16 %v773
    %v1021 = vunpack.c.l.b16 %v774
    %v1022 = vunpack.c.l.b16 %v775
    %v1023 = vunpack.c.l.b16 %v776
    %v1024 = vunpack.c.l.b16 %v777
    %v1025 = vunpack.c.l.b16 %v778
    %v1026 = vunpack.c.l.b16 %v779
    %v1027 = vunpack.c.l.b16 %v780
    %v1028 = vunpack.c.l.b16 %v781
    %v1029 = vunpack.c.l.b16 %v782
    %v1030 = vunpack.c.l.b16 %v783
    %v1031 = vunpack.c.l.b16 %v784
    %v1032 = vunpack.c.l.b16 %v785
    %v1033 = vunpack.c.l.b16 %v786
    %v1034 = vunpack.c.l.b16 %v787
    %v1035 = vunpack.c.l.b16 %v788
    %v1036 = vunpack.c.l.b16 %v789
    %v1037 = vunpack.c.l.b16 %v790
    %v1038 = vunpack.c.l.b16 %v791
    %v1039 = vunpack.c.l.b16 %v792
    %v1040 = vunpack.c.l.b16 %v793
    %v1041 = vunpack.c.l.b16 %v794
    %v1042 = vunpack.c.l.b16 %v795
    %v1043 = vpack.c.b16 %v924, %v923
    %v1044 = vpack.c.b16 %v926, %v925
    %v1045 = vpack.c.b16 %v928, %v927
    %v1046 = vpack.c.b16 %v930, %v929
    %v1047 = vpack.c.b16 %v932, %v931
    %v1048 = vpack.c.b16 %v934, %v933
    %v1049 = vpack.c.b16 %v936, %v935
    %v1050 = vpack.c.b16 %v938, %v937
    %v1051 = vpack.c.b16 %v940, %v939
    %v1052 = vpack.c.b16 %v942, %v941
    %v1053 = vpack.c.b16 %v944, %v943
    %v1054 = vpack.c.b16 %v946, %v945
    %v1055 = vpack.c.b16 %v948, %v947
    %v1056 = vpack.c.b16 %v950, %v949
    %v1057 = vpack.c.b16 %v952, %v951
    %v1058 = vpack.c.b16 %v954, %v953
    %v1059 = vpack.c.b16 %v956, %v955
    %v1060 = vpack.c.b16 %v958, %v957
    %v1061 = vpack.c.b16 %v960, %v959
    %v1062 = vpack.c.b16 %v962, %v961
    %v1063 = vpack.c.b16 %v964, %v963
    %v1064 = vpack.c.b16 %v966, %v965
    %v1065 = vpack.c.b16 %v968, %v967
    %v1066 = vpack.c.b16 %v970, %v969
    %v1067 = vpack.c.b16 %v972, %v971
    %v1068 = vpack.c.b16 %v974, %v973
    %v1069 = vpack.c.b16 %v976, %v975
    %v1070 = vpack.c.b16 %v978, %v977
    %v1071 = vpack.c.b16 %v980, %v979
    %v1072 = vpack.c.b16 %v982, %v981
    %v1073 = vpack.c.b16 %v984, %v983
    %v1074 = vpack.c.b16 %v986, %v985
    %v1075 = vpack.c.b16 %v988, %v987
    %v1076 = vpack.c.b16 %v990, %v989
    %v1077 = vpack.c.b16 %v992, %v991
    %v1078 = vpack.c.b16 %v994, %v993
    %v1079 = vpack.c.b16 %v996, %v995
    %v1080 = vpack.c.b16 %v998, %v997
    %v1081 = vpack.c.b16 %v1000, %v999
    %v1082 = vpack.c.b16 %v1002, %v1001
    %v1083 = vpack.c.b16 %v1004, %v1003
    %v1084 = vpack.c.b16 %v1006, %v1005
    %v1085 = vpack.c.b16 %v1008, %v1007
    %v1086 = vpack.c.b16 %v1010, %v1009
    %v1087 = vpack.c.b16 %v1012, %v1011
    %v1088 = vpack.c.b16 %v1014, %v1013
    %v1089 = vpack.c.b16 %v1016, %v1015
    %v1090 = vpack.c.b16 %v1018, %v1017
    %v1091 = vpack.c.b16 %v1020, %v1019
    %v1092 = vpack.c.b16 %v1022, %v1021
    %v1093 = vpack.c.b16 %v1024, %v1023
    %v1094 = vpack.c.b16 %v1026, %v1025
    %v1095 = vpack.c.b16 %v1028, %v1027
    %v1096 = vpack.c.b16 %v1030, %v1029
    %v1097 = vpack.c.b16 %v1032, %v1031
    %v1098 = vpack.c.b16 %v1034, %v1033
    %v1099 = vpack.c.b16 %v1036, %v1035
    %v1100 = vpack.c.b16 %v1038, %v1037
    %v1101 = vpack.c.b16 %v1040, %v1039
    %v1102 = vpack.c.b16 %v1042, %v1041
    %vm1163 = vcmask 523264
    %v1165 = vsel %vm1163, %v675, 0
    %1167 = vmatprep.subr.bf16.mxu0 0
    %1168 = vmatpush1.bf16.msra.mxu0 %v1043
    %1169 = vmatprep.subr.bf16.mxu0 0
    %1170 = vmatpush1.bf16.msra.mxu0 %v1044
    %1171 = vmatprep.subr.bf16.mxu0 0
    %1172 = vmatpush1.bf16.msra.mxu0 %v1045
    %1173 = vmatprep.subr.bf16.mxu0 0
    %1174 = vmatpush1.bf16.msra.mxu0 %v1046
    %1175 = vmatprep.subr.bf16.mxu0 0
    %1176 = vmatpush1.bf16.msra.mxu0 %v1047
    %1177 = vmatprep.subr.bf16.mxu0 0
    %1178 = vmatpush1.bf16.msra.mxu0 %v1048
    %1179 = vmatprep.subr.bf16.mxu0 0
    %1180 = vmatpush1.bf16.msra.mxu0 %v1049
    %1181 = vmatprep.subr.bf16.mxu0 0
    %1182 = vmatpush1.bf16.msra.mxu0 %v1050
    %1183 = vmatprep.subr.bf16.mxu0 0
    %1184 = vmatpush1.bf16.msra.mxu0 %v1051
    %1185 = vmatprep.subr.bf16.mxu0 0
    %1186 = vmatpush1.bf16.msra.mxu0 %v1052
    %1187 = vmatprep.subr.bf16.mxu0 0
    %1188 = vmatpush1.bf16.msra.mxu0 %v1053
    %1189 = vmatprep.subr.bf16.mxu0 0
    %1190 = vmatpush1.bf16.msra.mxu0 %v1054
    %1191 = vmatprep.subr.bf16.mxu0 0
    %1192 = vmatpush1.bf16.msra.mxu0 %v1055
    %1193 = vmatprep.subr.bf16.mxu0 0
    %1194 = vmatpush1.bf16.msra.mxu0 %v1056
    %1195 = vmatprep.subr.bf16.mxu0 0
    %1196 = vmatpush1.bf16.msra.mxu0 %v1057
    %1197 = vmatprep.subr.bf16.mxu0 0
    %1198 = vmatpush1.bf16.msra.mxu0 %v1058
    %1199 = vmatprep.mubr.bf16.mxu0 %v669
    %1200 = vmatmul.mubr.bf16.gmra.mrb[0].mxu0 %v668
    %v1201 = vpop.f32.mrb[0].mxu0
    %v1202 = vadd.f32 %v801, %v1201
    %v1203 = vpop.f32.mrb[0].mxu0
    %v1204 = vpop.f32.mrb[0].mxu0
    %v1205 = vadd.f32 %v801, %v1204
    %v1206 = vpop.f32.mrb[0].mxu0
    %1207 = vdwg.mxu0
    %1208 = vmatprep.subr.bf16.mxu0 0
    %1209 = vmatpush1.bf16.msra.mxu0 %v1059
    %1210 = vmatprep.subr.bf16.mxu0 0
    %1211 = vmatpush1.bf16.msra.mxu0 %v1060
    %1212 = vmatprep.subr.bf16.mxu0 0
    %1213 = vmatpush1.bf16.msra.mxu0 %v1061
    %1214 = vmatprep.subr.bf16.mxu0 0
    %1215 = vmatpush1.bf16.msra.mxu0 %v1062
    %1216 = vmatprep.subr.bf16.mxu0 0
    %1217 = vmatpush1.bf16.msra.mxu0 %v1063
    %1218 = vmatprep.subr.bf16.mxu0 0
    %1219 = vmatpush1.bf16.msra.mxu0 %v1064
    %1220 = vmatprep.subr.bf16.mxu0 0
    %1221 = vmatpush1.bf16.msra.mxu0 %v1065
    %1222 = vmatprep.subr.bf16.mxu0 0
    %1223 = vmatpush1.bf16.msra.mxu0 %v1066
    %1224 = vmatprep.subr.bf16.mxu0 0
    %1225 = vmatpush1.bf16.msra.mxu0 %v1067
    %1226 = vmatprep.subr.bf16.mxu0 0
    %1227 = vmatpush1.bf16.msra.mxu0 %v1068
    %1228 = vmatprep.subr.bf16.mxu0 0
    %1229 = vmatpush1.bf16.msra.mxu0 %v1069
    %1230 = vmatprep.subr.bf16.mxu0 0
    %1231 = vmatpush1.bf16.msra.mxu0 %v1070
    %1232 = vmatprep.subr.bf16.mxu0 0
    %1233 = vmatpush1.bf16.msra.mxu0 %v1071
    %1234 = vmatprep.subr.bf16.mxu0 0
    %1235 = vmatpush1.bf16.msra.mxu0 %v1072
    %1236 = vmatprep.subr.bf16.mxu0 0
    %1237 = vmatpush1.bf16.msra.mxu0 %v1073
    %1238 = vmatprep.subr.bf16.mxu0 0
    %1239 = vmatpush1.bf16.msra.mxu0 %v1074
    %1240 = vmatprep.mubr.bf16.mxu0 %v671
    %1241 = vmatmul.mubr.bf16.gmra.mrb[0].mxu0 %v670
    %v1242 = vpop.f32.mrb[0].mxu0
    %v1243 = vadd.f32 %v1202, %v1242
    %v1244 = vpop.f32.mrb[0].mxu0
    %v1245 = vpop.f32.mrb[0].mxu0
    %v1246 = vadd.f32 %v1205, %v1245
    %v1247 = vpop.f32.mrb[0].mxu0
    %1248 = vdwg.mxu0
    %1249 = vmatprep.subr.bf16.mxu0 0
    %1250 = vmatpush1.bf16.msra.mxu0 %v1075
    %1251 = vmatprep.subr.bf16.mxu0 0
    %1252 = vmatpush1.bf16.msra.mxu0 %v1076
    %1253 = vmatprep.subr.bf16.mxu0 0
    %1254 = vmatpush1.bf16.msra.mxu0 %v1077
    %1255 = vmatprep.subr.bf16.mxu0 0
    %1256 = vmatpush1.bf16.msra.mxu0 %v1078
    %1257 = vmatprep.subr.bf16.mxu0 0
    %1258 = vmatpush1.bf16.msra.mxu0 %v1079
    %1259 = vmatprep.subr.bf16.mxu0 0
    %1260 = vmatpush1.bf16.msra.mxu0 %v1080
    %1261 = vmatprep.subr.bf16.mxu0 0
    %1262 = vmatpush1.bf16.msra.mxu0 %v1081
    %1263 = vmatprep.subr.bf16.mxu0 0
    %1264 = vmatpush1.bf16.msra.mxu0 %v1082
    %1265 = vmatprep.subr.bf16.mxu0 0
    %1266 = vmatpush1.bf16.msra.mxu0 %v1083
    %1267 = vmatprep.subr.bf16.mxu0 0
    %1268 = vmatpush1.bf16.msra.mxu0 %v1084
    %1269 = vmatprep.subr.bf16.mxu0 0
    %1270 = vmatpush1.bf16.msra.mxu0 %v1085
    %1271 = vmatprep.subr.bf16.mxu0 0
    %1272 = vmatpush1.bf16.msra.mxu0 %v1086
    %1273 = vmatprep.subr.bf16.mxu0 0
    %1274 = vmatpush1.bf16.msra.mxu0 %v1087
    %1275 = vmatprep.subr.bf16.mxu0 0
    %1276 = vmatpush1.bf16.msra.mxu0 %v1088
    %1277 = vmatprep.subr.bf16.mxu0 0
    %1278 = vmatpush1.bf16.msra.mxu0 %v1089
    %1279 = vmatprep.subr.bf16.mxu0 0
    %1280 = vmatpush1.bf16.msra.mxu0 %v1090
    %1281 = vmatprep.mubr.bf16.mxu0 %v673
    %1282 = vmatmul.mubr.bf16.gmra.mrb[0].mxu0 %v672
    %v1283 = vpop.f32.mrb[0].mxu0
    %v1284 = vadd.f32 %v1243, %v1283
    %v1285 = vpop.f32.mrb[0].mxu0
    %v1286 = vpop.f32.mrb[0].mxu0
    %v1287 = vadd.f32 %v1246, %v1286
    %v1288 = vpop.f32.mrb[0].mxu0
    %1289 = vdwg.mxu0
    %1290 = vmatprep.subr.bf16.mxu0 0
    %1291 = vmatpush1.bf16.msra.mxu0 %v1091
    %1292 = vmatprep.subr.bf16.mxu0 0
    %1293 = vmatpush1.bf16.msra.mxu0 %v1092
    %1294 = vmatprep.subr.bf16.mxu0 0
    %1295 = vmatpush1.bf16.msra.mxu0 %v1093
    %1296 = vmatprep.subr.bf16.mxu0 0
    %1297 = vmatpush1.bf16.msra.mxu0 %v1094
    %1298 = vmatprep.subr.bf16.mxu0 0
    %1299 = vmatpush1.bf16.msra.mxu0 %v1095
    %1300 = vmatprep.subr.bf16.mxu0 0
    %1301 = vmatpush1.bf16.msra.mxu0 %v1096
    %1302 = vmatprep.subr.bf16.mxu0 0
    %1303 = vmatpush1.bf16.msra.mxu0 %v1097
    %1304 = vmatprep.subr.bf16.mxu0 0
    %1305 = vmatpush1.bf16.msra.mxu0 %v1098
    %1306 = vmatprep.subr.bf16.mxu0 0
    %1307 = vmatpush1.bf16.msra.mxu0 %v1099
    %1308 = vmatprep.subr.bf16.mxu0 0
    %1309 = vmatpush1.bf16.msra.mxu0 %v1100
    %1310 = vmatprep.subr.bf16.mxu0 0
    %1311 = vmatpush1.bf16.msra.mxu0 %v1101
    %1312 = vmatprep.subr.bf16.mxu0 0
    %1313 = vmatpush1.bf16.msra.mxu0 %v1102
    %1314 = vmatprep.subr.bf16.mxu0 0
    %1315 = vmatpush1.bf16.msra.mxu0 0
    %1316 = vmatprep.subr.bf16.mxu0 0
    %1317 = vmatpush1.bf16.msra.mxu0 0
    %1318 = vmatprep.subr.bf16.mxu0 0
    %1319 = vmatpush1.bf16.msra.mxu0 0
    %1320 = vmatprep.subr.bf16.mxu0 0
    %1321 = vmatpush1.bf16.msra.mxu0 0
    %1322 = vmatprep.mubr.bf16.mxu0 %v1165
    %1323 = vmatmul.mubr.bf16.gmra.mrb[0].mxu0 %v674
    %v1324 = vpop.f32.mrb[0].mxu0
    %v1325 = vadd.f32 %v1284, %v1324
    %v1326 = vpop.f32.mrb[0].mxu0
    %v1327 = vpop.f32.mrb[0].mxu0
    %v1328 = vadd.f32 %v1287, %v1327
    %v1329 = vpop.f32.mrb[0].mxu0
    %1330 = vdwg.mxu0
    %v1331 = vmax.f32 %v1325, 0.0
    %v1332 = vmax.f32 %v1328, 0.0
    %v1333 = vpack.c.bf16 %v1332, %v1331
    %1334 = vst [vmem:[#allocation4] sm:$0x7] %v1333
    %v1336 = vunpack.c.l.b16 %v1333
    %v1337 = vpack.c.b16 %v1336, %v1336
    %v1339 = vshrl.u32 %v1337, 16
    %v1341 = vrot.slane %v1339, 4
    %v1342 = vshll.u32 %v1337, 16
    %v1344 = vrot.slane %v1342, 5
    %v1345 = vor.u32 %v1341, %v1344
    %v1346 = vrot.slane %v1345, 4
    %1348 = vst [vmem:[#allocation4 + $0x4] sm:$0x7] %v1346
    %v1349 = vrot.slane %v1337, 5
    %v1350 = vrot.slane %v1349, 4
    %1352 = vst [vmem:[#allocation4 + $0x8] sm:$0x7] %v1350
    %v1353 = vunpack.c.h.b16 %v1333
    %v1354 = vpack.c.b16 %v1353, %v1353
    %v1355 = vrot.slane %v1354, 5
    %v1356 = vrot.slane %v1355, 4
    %1359 = vst [vmem:[#allocation4] sm:$0x8] %v1355
    %1360 = vst [vmem:[#allocation4 + $0xc] sm:$0x3] %v1356
    %v1362 = vshrl.u32 %v1354, 16
    %v1364 = vrot.slane %v1362, 5
    %v1365 = vshll.u32 %v1354, 16
    %v1367 = vrot.slane %v1365, 6
    %v1368 = vor.u32 %v1364, %v1367
    %v1369 = vrot.slane %v1368, 4
    %1372 = vst [vmem:[#allocation4 + $0x4] sm:$0x8] %v1368
    %1373 = vst [vmem:[#allocation4 + $0x10] sm:$0x3] %v1369
    %v1374 = vrot.slane %v1354, 6
    %v1375 = vrot.slane %v1374, 4
    %1378 = vst [vmem:[#allocation4 + $0x8] sm:$0x8] %v1374
    %1379 = vst [vmem:[#allocation4 + $0x14] sm:$0x3] %v1375
    %v1380 = vld [vmem:[#allocation4] sm:$0xff]
    %v1381 = vld [vmem:[#allocation4 + $0x8] sm:$0xf]
    %v1382 = vld [vmem:[#allocation4 + $0xc] sm:$0x33]
    %v1383 = vld [vmem:[#allocation4 + $0x14] sm:$0x3]
    %v1384 = vld [vmem:[%s5] sm:$0xf]
    %v1385 = vld [vmem:[%s5 + $0x4] sm:$0xf]
    %v1386 = vld [vmem:[%s5 + $0x8] sm:$0xf]
    %v1387 = vld [vmem:[%s5 + $0xc] sm:$0xf]
    %v1388 = vld [vmem:[%s5 + $0x10] sm:$0xf]
    %v1389 = vld [vmem:[%s5 + $0x14] sm:$0xf]
    %v1390 = vld [vmem:[%s5 + $0x18] sm:$0xf]
    %v1391 = vld [vmem:[%s5 + $0x1c] sm:$0xf]
    %v1392 = vld [vmem:[%s5 + $0x20] sm:$0xf]
    %v1393 = vld [vmem:[%s5 + $0x24] sm:$0xf]
    %v1394 = vld [vmem:[%s5 + $0x28] sm:$0xf]
    %v1395 = vld [vmem:[%s5 + $0x2c] sm:$0xf]
    %v1396 = vld [vmem:[%s5 + $0x30] sm:$0xf]
    %v1397 = vld [vmem:[%s5 + $0x34] sm:$0xf]
    %v1398 = vld [vmem:[%s5 + $0x38] sm:$0xf]
    %v1399 = vld [vmem:[%s5 + $0x3c] sm:$0xf]
    %v1400 = vld [vmem:[%s5 + $0x40] sm:$0xf]
    %v1401 = vld [vmem:[%s5 + $0x44] sm:$0xf]
    %v1402 = vld [vmem:[%s5 + $0x48] sm:$0xf]
    %v1403 = vld [vmem:[%s5 + $0x4c] sm:$0xf]
    %v1404 = vld [vmem:[%s5 + $0x50] sm:$0xf]
    %v1405 = vld [vmem:[%s5 + $0x54] sm:$0xf]
    %v1406 = vld [vmem:[%s5 + $0x58] sm:$0xf]
    %v1407 = vld [vmem:[%s5 + $0x5c] sm:$0xf]
    %v1408 = vld [vmem:[%s5 + $0x60] sm:$0xf]
    %v1409 = vld [vmem:[%s5 + $0x64] sm:$0xf]
    %v1410 = vld [vmem:[%s5 + $0x68] sm:$0xf]
    %v1411 = vld [vmem:[%s5 + $0x6c] sm:$0xf]
    %v1412 = vld [vmem:[%s5 + $0x70] sm:$0xf]
    %v1413 = vld [vmem:[%s5 + $0x74] sm:$0xf]
    %v1414 = vld [vmem:[%s5 + $0x78] sm:$0xf]
    %v1415 = vld [vmem:[%s5 + $0x7c] sm:$0xf]
    %v1416 = vld [vmem:[%s5 + $0x80] sm:$0xf]
    %v1417 = vld [vmem:[%s5 + $0x84] sm:$0xf]
    %v1418 = vld [vmem:[%s5 + $0x88] sm:$0xf]
    %v1419 = vld [vmem:[%s5 + $0x8c] sm:$0xf]
    %v1420 = vld [vmem:[%s5 + $0x90] sm:$0xf]
    %v1421 = vld [vmem:[%s5 + $0x94] sm:$0xf]
    %v1422 = vld [vmem:[%s5 + $0x98] sm:$0xf]
    %v1423 = vld [vmem:[%s5 + $0x9c] sm:$0xf]
    %v1424 = vld [vmem:[%s5 + $0xa0] sm:$0xf]
    %v1425 = vld [vmem:[%s5 + $0xa4] sm:$0xf]
    %v1426 = vld [vmem:[%s5 + $0xa8] sm:$0xf]
    %v1427 = vld [vmem:[%s5 + $0xac] sm:$0xf]
    %v1428 = vld [vmem:[%s5 + $0xb0] sm:$0xf]
    %v1429 = vld [vmem:[%s5 + $0xb4] sm:$0xf]
    %v1430 = vld [vmem:[%s5 + $0xb8] sm:$0xf]
    %v1431 = vld [vmem:[%s5 + $0xbc] sm:$0xf]
    %v1432 = vld [vmem:[%s6] sm:$0x1]
    %v1434 = vlaneseq
    %v1435 = vshrl.u32 %v1434, 7
    %v1436 = vsub.s32 0, %v1435
    %v1437 = vrot.slane %v1432, %v1436
    %v1443 = vunpack.c.l.b16 %v1380
    %v1444 = vunpack.c.h.b16 %v1380
    %v1445 = vunpack.c.l.b16 %v1381
    %v1446 = vunpack.c.l.b16 %v1382
    %v1447 = vunpack.c.h.b16 %v1382
    %v1448 = vunpack.c.l.b16 %v1383
    %v1449 = vpack.c.b16 %v1446, %v1443
    %v1450 = vpack.c.b16 %v1447, %v1444
    %v1451 = vpack.c.b16 %v1448, %v1445
    %v1503 = vunpack.c.l.b16 %v1384
    %v1504 = vunpack.c.l.b16 %v1385
    %v1505 = vunpack.c.l.b16 %v1386
    %v1506 = vunpack.c.l.b16 %v1387
    %v1507 = vunpack.c.l.b16 %v1388
    %v1508 = vunpack.c.l.b16 %v1389
    %v1509 = vunpack.c.l.b16 %v1390
    %v1510 = vunpack.c.l.b16 %v1391
    %v1511 = vunpack.c.l.b16 %v1392
    %v1512 = vunpack.c.l.b16 %v1393
    %v1513 = vunpack.c.l.b16 %v1394
    %v1514 = vunpack.c.l.b16 %v1395
    %v1515 = vunpack.c.l.b16 %v1396
    %v1516 = vunpack.c.l.b16 %v1397
    %v1517 = vunpack.c.l.b16 %v1398
    %v1518 = vunpack.c.l.b16 %v1399
    %v1519 = vunpack.c.l.b16 %v1400
    %v1520 = vunpack.c.l.b16 %v1401
    %v1521 = vunpack.c.l.b16 %v1402
    %v1522 = vunpack.c.l.b16 %v1403
    %v1523 = vunpack.c.l.b16 %v1404
    %v1524 = vunpack.c.l.b16 %v1405
    %v1525 = vunpack.c.l.b16 %v1406
    %v1526 = vunpack.c.l.b16 %v1407
    %v1527 = vunpack.c.l.b16 %v1408
    %v1528 = vunpack.c.l.b16 %v1409
    %v1529 = vunpack.c.l.b16 %v1410
    %v1530 = vunpack.c.l.b16 %v1411
    %v1531 = vunpack.c.l.b16 %v1412
    %v1532 = vunpack.c.l.b16 %v1413
    %v1533 = vunpack.c.l.b16 %v1414
    %v1534 = vunpack.c.l.b16 %v1415
    %v1535 = vunpack.c.l.b16 %v1416
    %v1536 = vunpack.c.l.b16 %v1417
    %v1537 = vunpack.c.l.b16 %v1418
    %v1538 = vunpack.c.l.b16 %v1419
    %v1539 = vunpack.c.l.b16 %v1420
    %v1540 = vunpack.c.l.b16 %v1421
    %v1541 = vunpack.c.l.b16 %v1422
    %v1542 = vunpack.c.l.b16 %v1423
    %v1543 = vunpack.c.l.b16 %v1424
    %v1544 = vunpack.c.l.b16 %v1425
    %v1545 = vunpack.c.l.b16 %v1426
    %v1546 = vunpack.c.l.b16 %v1427
    %v1547 = vunpack.c.l.b16 %v1428
    %v1548 = vunpack.c.l.b16 %v1429
    %v1549 = vunpack.c.l.b16 %v1430
    %v1550 = vunpack.c.l.b16 %v1431
    %v1551 = vpack.c.b16 %v1504, %v1503
    %v1552 = vpack.c.b16 %v1506, %v1505
    %v1553 = vpack.c.b16 %v1508, %v1507
    %v1554 = vpack.c.b16 %v1510, %v1509
    %v1555 = vpack.c.b16 %v1512, %v1511
    %v1556 = vpack.c.b16 %v1514, %v1513
    %v1557 = vpack.c.b16 %v1516, %v1515
    %v1558 = vpack.c.b16 %v1518, %v1517
    %v1559 = vpack.c.b16 %v1520, %v1519
    %v1560 = vpack.c.b16 %v1522, %v1521
    %v1561 = vpack.c.b16 %v1524, %v1523
    %v1562 = vpack.c.b16 %v1526, %v1525
    %v1563 = vpack.c.b16 %v1528, %v1527
    %v1564 = vpack.c.b16 %v1530, %v1529
    %v1565 = vpack.c.b16 %v1532, %v1531
    %v1566 = vpack.c.b16 %v1534, %v1533
    %v1567 = vpack.c.b16 %v1536, %v1535
    %v1568 = vpack.c.b16 %v1538, %v1537
    %v1569 = vpack.c.b16 %v1540, %v1539
    %v1570 = vpack.c.b16 %v1542, %v1541
    %v1571 = vpack.c.b16 %v1544, %v1543
    %v1572 = vpack.c.b16 %v1546, %v1545
    %v1573 = vpack.c.b16 %v1548, %v1547
    %v1574 = vpack.c.b16 %v1550, %v1549
    %1599 = vmatprep.subr.bf16.mxu0 0
    %1600 = vmatpush1.bf16.msra.mxu0 %v1551
    %1601 = vmatprep.subr.bf16.mxu0 0
    %1602 = vmatpush1.bf16.msra.mxu0 %v1552
    %1603 = vmatprep.subr.bf16.mxu0 0
    %1604 = vmatpush1.bf16.msra.mxu0 %v1553
    %1605 = vmatprep.subr.bf16.mxu0 0
    %1606 = vmatpush1.bf16.msra.mxu0 %v1554
    %1607 = vmatprep.subr.bf16.mxu0 0
    %1608 = vmatpush1.bf16.msra.mxu0 %v1555
    %1609 = vmatprep.subr.bf16.mxu0 0
    %1610 = vmatpush1.bf16.msra.mxu0 %v1556
    %1611 = vmatprep.subr.bf16.mxu0 0
    %1612 = vmatpush1.bf16.msra.mxu0 %v1557
    %1613 = vmatprep.subr.bf16.mxu0 0
    %1614 = vmatpush1.bf16.msra.mxu0 %v1558
    %1615 = vmatprep.subr.bf16.mxu0 0
    %1616 = vmatpush1.bf16.msra.mxu0 %v1559
    %1617 = vmatprep.subr.bf16.mxu0 0
    %1618 = vmatpush1.bf16.msra.mxu0 %v1560
    %1619 = vmatprep.subr.bf16.mxu0 0
    %1620 = vmatpush1.bf16.msra.mxu0 %v1561
    %1621 = vmatprep.subr.bf16.mxu0 0
    %1622 = vmatpush1.bf16.msra.mxu0 %v1562
    %1623 = vmatprep.subr.bf16.mxu0 0
    %1624 = vmatpush1.bf16.msra.mxu0 %v1563
    %1625 = vmatprep.subr.bf16.mxu0 0
    %1626 = vmatpush1.bf16.msra.mxu0 %v1564
    %1627 = vmatprep.subr.bf16.mxu0 0
    %1628 = vmatpush1.bf16.msra.mxu0 %v1565
    %1629 = vmatprep.subr.bf16.mxu0 0
    %1630 = vmatpush1.bf16.msra.mxu0 %v1566
    %1631 = vmatprep.mubr.bf16.mxu0 %v1450
    %1632 = vmatmul.mubr.bf16.gmra.mrb[0].mxu0 %v1449
    %v1633 = vpop.f32.mrb[0].mxu0
    %v1634 = vadd.f32 %v1437, %v1633
    %v1635 = vpop.f32.mrb[0].mxu0
    %v1636 = vpop.f32.mrb[0].mxu0
    %v1637 = vadd.f32 %v1437, %v1636
    %v1638 = vpop.f32.mrb[0].mxu0
    %1639 = vdwg.mxu0
    %1640 = vmatprep.subr.bf16.mxu0 0
    %1641 = vmatpush1.bf16.msra.mxu0 %v1567
    %1642 = vmatprep.subr.bf16.mxu0 0
    %1643 = vmatpush1.bf16.msra.mxu0 %v1568
    %1644 = vmatprep.subr.bf16.mxu0 0
    %1645 = vmatpush1.bf16.msra.mxu0 %v1569
    %1646 = vmatprep.subr.bf16.mxu0 0
    %1647 = vmatpush1.bf16.msra.mxu0 %v1570
    %1648 = vmatprep.subr.bf16.mxu0 0
    %1649 = vmatpush1.bf16.msra.mxu0 %v1571
    %1650 = vmatprep.subr.bf16.mxu0 0
    %1651 = vmatpush1.bf16.msra.mxu0 %v1572
    %1652 = vmatprep.subr.bf16.mxu0 0
    %1653 = vmatpush1.bf16.msra.mxu0 %v1573
    %1654 = vmatprep.subr.bf16.mxu0 0
    %1655 = vmatpush1.bf16.msra.mxu0 %v1574
    %1656 = vmatprep.subr.bf16.mxu0 0
    %1657 = vmatpush1.bf16.msra.mxu0 0
    %1658 = vmatprep.subr.bf16.mxu0 0
    %1659 = vmatpush1.bf16.msra.mxu0 0
    %1660 = vmatprep.subr.bf16.mxu0 0
    %1661 = vmatpush1.bf16.msra.mxu0 0
    %1662 = vmatprep.subr.bf16.mxu0 0
    %1663 = vmatpush1.bf16.msra.mxu0 0
    %1664 = vmatprep.subr.bf16.mxu0 0
    %1665 = vmatpush1.bf16.msra.mxu0 0
    %1666 = vmatprep.subr.bf16.mxu0 0
    %1667 = vmatpush1.bf16.msra.mxu0 0
    %1668 = vmatprep.subr.bf16.mxu0 0
    %1669 = vmatpush1.bf16.msra.mxu0 0
    %1670 = vmatprep.subr.bf16.mxu0 0
    %1671 = vmatpush1.bf16.msra.mxu0 0
    %1672 = vmatprep.mubr.bf16.mxu0 0
    %1673 = vmatmul.mubr.bf16.gmra.mrb[0].mxu0 %v1451
    %v1674 = vpop.f32.mrb[0].mxu0
    %v1675 = vadd.f32 %v1634, %v1674
    %v1676 = vpop.f32.mrb[0].mxu0
    %v1677 = vpop.f32.mrb[0].mxu0
    %v1678 = vadd.f32 %v1637, %v1677
    %v1679 = vpop.f32.mrb[0].mxu0
    %1680 = vdwg.mxu0
    %v1681 = vpack.c.bf16 %v1678, %v1675
    %vm1682 = vcmask 778240
    %vm1683 = vmand %vm1682, %vm222
    %v1684 = vld [vmem:[#allocation5] sm:$0x1]
    %v1685 = vsel %vm1683, %v1681, %v1684
    %1686 = vst [vmem:[#allocation5] sm:$0x1] %v1685
    %v1689 = vunpack.c.l.s4 1966171168
    %v1690 = vunpack.c.0.s8 %v1689
    %v1691 = vlaneseq
    %v1692 = vshrl.u32 %v1691, 7
    %v1693 = vsub.s32 %v1690, %v1692
    %v1694 = vrot.slane %v1681, %v1693
    %v1696 = vunpack.c.l.s4 1966171168
    %v1697 = vunpack.c.0.s8 %v1696
    %v1698 = vlaneseq
    %v1699 = vshrl.u32 %v1698, 7
    %v1700 = vsub.s32 %v1697, %v1699
    %v1701 = vrot.slane %v1694, %v1700
    %v1703 = vshrl.u32 %v1701, 16
    %v1705 = vrot.slane %v1703, 7
    %v1706 = vrot.slane %v1705, 1
    %1707 = vrot.lane.b32.xlu0 %v1706, 96
    %v1708 = vpop.permute.xlu0 %1707
    %v1709 = vrot.slane %v1708, 7
    %v1710 = vsel %vm103, %v1709, %v1708
    %vm1712 = vcmask 1041152
    %vm1713 = vmand %vm1712, %vm222
    %vm1714 = vcmask 517121
    %vm1715 = vmand %vm1714, %vm170
    %vm1716 = vmor %vm1715, %vm1713
    %v1717 = vld [vmem:[#allocation5] sm:$0x3]
    %v1718 = vsel %vm1716, %v1710, %v1717
    %1719 = vst [vmem:[#allocation5] sm:$0x3] %v1718
    %v1720 = vcombine.high %v1694, %v1694
    %v1722 = vunpack.c.l.s4 1966171168
    %v1723 = vunpack.c.0.s8 %v1722
    %v1724 = vlaneseq
    %v1725 = vshrl.u32 %v1724, 7
    %v1726 = vsub.s32 %v1723, %v1725
    %v1727 = vrot.slane %v1720, %v1726
    %1728 = vrot.lane.b32.xlu0 %v1727, 64
    %v1729 = vpop.permute.xlu0 %1728
    %v1730 = vrot.slane %v1729, 7
    %v1731 = vsel %vm548, %v1730, %v1729
    %vm1733 = vcmask 1040896
    %vm1734 = vmand %vm1733, %vm222
    %vm1735 = vcmask 254977
    %vm1736 = vmand %vm1735, %vm170
    %vm1737 = vmor %vm1736, %vm1734
    %v1738 = vld [vmem:[#allocation5 + $0x1] sm:$0x3]
    %v1739 = vsel %vm1737, %v1731, %v1738
    %1740 = vst [vmem:[#allocation5 + $0x1] sm:$0x3] %v1739
    %v1742 = vshrl.u32 %v1727, 16
    %v1744 = vrot.slane %v1742, 7
    %v1745 = vrot.slane %v1744, 1
    %1746 = vrot.lane.b32.xlu0 %v1745, 32
    %v1747 = vpop.permute.xlu0 %1746
    %vm1749 = vcmask 1040640
    %vm1750 = vmand %vm1749, %vm222
    %v1751 = vld [vmem:[#allocation5 + $0x2] sm:$0x1]
    %v1752 = vsel %vm1750, %v1747, %v1751
    %1753 = vst [vmem:[#allocation5 + $0x2] sm:$0x1] %v1752
    %v1754 = vcombine.high %v1701, %v1701
    %v1756 = vld [vmem:[#allocation5 + $0x3] sm:$0x1]
    %v1757 = vsel %vm1683, %v1754, %v1756
    %1758 = vst [vmem:[#allocation5 + $0x3] sm:$0x1] %v1757
    %v1760 = vshrl.u32 %v1754, 16
    %v1762 = vrot.slane %v1760, 7
    %v1763 = vrot.slane %v1762, 1
    %1764 = vrot.lane.b32.xlu0 %v1763, 96
    %v1765 = vpop.permute.xlu0 %1764
    %v1766 = vrot.slane %v1765, 7
    %v1767 = vsel %vm103, %v1766, %v1765
    %v1769 = vld [vmem:[#allocation5 + $0x3] sm:$0x3]
    %v1770 = vsel %vm1716, %v1767, %v1769
    %1771 = vst [vmem:[#allocation5 + $0x3] sm:$0x3] %v1770
    %v1772 = vcombine.high %v1727, %v1727
    %v1774 = vshll.u32 %v1772, 16
    %vm1777 = vsmask.f32 7938
    %vm1778 = vmand %vm1682, %vm1777
    %v1779 = vld [vmem:[#allocation5] sm:$0x1]
    %v1780 = vsel %vm1778, %v1774, %v1779
    %1781 = vst [vmem:[#allocation5] sm:$0x1] %v1780
    %1782 = vrot.lane.b32.xlu0 %v1772, 96
    %v1783 = vpop.permute.xlu0 %1782
    %v1784 = vrot.slane %v1783, 7
    %v1785 = vsel %vm103, %v1784, %v1783
    %vm1787 = vmand %vm1712, %vm1777
    %vm1788 = vsmask.f32 7942
    %vm1789 = vmand %vm1714, %vm1788
    %vm1790 = vmor %vm1789, %vm1787
    %v1791 = vld [vmem:[#allocation5] sm:$0x3]
    %v1792 = vsel %vm1790, %v1785, %v1791
    %1793 = vst [vmem:[#allocation5] sm:$0x3] %v1792
    %v1794 = vcombine.high %v1681, %v1681
    %v1796 = vunpack.c.l.s4 1966171168
    %v1797 = vunpack.c.0.s8 %v1796
    %v1798 = vlaneseq
    %v1799 = vshrl.u32 %v1798, 7
    %v1800 = vsub.s32 %v1797, %v1799
    %v1801 = vrot.slane %v1794, %v1800
    %v1803 = vunpack.c.l.s4 1966171168
    %v1804 = vunpack.c.0.s8 %v1803
    %v1805 = vlaneseq
    %v1806 = vshrl.u32 %v1805, 7
    %v1807 = vsub.s32 %v1804, %v1806
    %v1808 = vrot.slane %v1801, %v1807
    %v1810 = vshll.u32 %v1808, 16
    %1812 = vrot.lane.b32.xlu0 %v1810, 64
    %v1813 = vpop.permute.xlu0 %1812
    %v1814 = vrot.slane %v1813, 7
    %v1815 = vsel %vm548, %v1814, %v1813
    %vm1817 = vmand %vm1733, %vm1777
    %vm1818 = vmand %vm1735, %vm1788
    %vm1819 = vmor %vm1818, %vm1817
    %v1820 = vld [vmem:[#allocation5 + $0x1] sm:$0x3]
    %v1821 = vsel %vm1819, %v1815, %v1820
    %1822 = vst [vmem:[#allocation5 + $0x1] sm:$0x3] %v1821
    %1823 = vrot.lane.b32.xlu0 %v1808, 32
    %v1824 = vpop.permute.xlu0 %1823
    %vm1826 = vmand %vm1749, %vm1777
    %v1827 = vld [vmem:[#allocation5 + $0x2] sm:$0x1]
    %v1828 = vsel %vm1826, %v1824, %v1827
    %1829 = vst [vmem:[#allocation5 + $0x2] sm:$0x1] %v1828
    %v1830 = vcombine.high %v1801, %v1801
    %v1832 = vunpack.c.l.s4 1966171168
    %v1833 = vunpack.c.0.s8 %v1832
    %v1834 = vlaneseq
    %v1835 = vshrl.u32 %v1834, 7
    %v1836 = vsub.s32 %v1833, %v1835
    %v1837 = vrot.slane %v1830, %v1836
    %v1839 = vshll.u32 %v1837, 16
    %v1842 = vld [vmem:[#allocation5 + $0x3] sm:$0x1]
    %v1843 = vsel %vm1778, %v1839, %v1842
    %1844 = vst [vmem:[#allocation5 + $0x3] sm:$0x1] %v1843
    %1845 = vrot.lane.b32.xlu0 %v1837, 96
    %v1846 = vpop.permute.xlu0 %1845
    %v1847 = vrot.slane %v1846, 7
    %v1848 = vsel %vm103, %v1847, %v1846
    %v1850 = vld [vmem:[#allocation5 + $0x3] sm:$0x3]
    %v1851 = vsel %vm1790, %v1848, %v1850
    %1852 = vst [vmem:[#allocation5 + $0x3] sm:$0x3] %v1851
    %v1853 = vld [vmem:[#allocation5] sm:$0x1f]
    %v1854 = vld [vmem:[%s7] sm:$0xf]
    %v1855 = vld [vmem:[%s7 + $0x4] sm:$0xf]
    %v1856 = vld [vmem:[%s7 + $0x8] sm:$0xf]
    %v1857 = vld [vmem:[%s7 + $0xc] sm:$0xf]
    %v1858 = vld [vmem:[%s7 + $0x10] sm:$0xf]
    %v1859 = vld [vmem:[%s7 + $0x14] sm:$0xf]
    %v1860 = vld [vmem:[%s7 + $0x18] sm:$0xf]
    %v1861 = vld [vmem:[%s7 + $0x1c] sm:$0xf]
    %v1862 = vld [vmem:[%s7 + $0x20] sm:$0xf]
    %v1863 = vld [vmem:[%s7 + $0x24] sm:$0xf]
    %v1864 = vld [vmem:[%s7 + $0x28] sm:$0xf]
    %v1865 = vld [vmem:[%s7 + $0x2c] sm:$0xf]
    %v1866 = vld [vmem:[%s7 + $0x30] sm:$0xf]
    %v1867 = vld [vmem:[%s7 + $0x34] sm:$0xf]
    %v1868 = vld [vmem:[%s7 + $0x38] sm:$0xf]
    %v1869 = vld [vmem:[%s7 + $0x3c] sm:$0xf]
    %v1870 = vld [vmem:[%s7 + $0x40] sm:$0xf]
    %v1871 = vld [vmem:[%s7 + $0x44] sm:$0xf]
    %v1872 = vld [vmem:[%s7 + $0x48] sm:$0xf]
    %v1873 = vld [vmem:[%s7 + $0x4c] sm:$0xf]
    %v1874 = vld [vmem:[%s7 + $0x50] sm:$0xf]
    %v1875 = vld [vmem:[%s7 + $0x54] sm:$0xf]
    %v1876 = vld [vmem:[%s7 + $0x58] sm:$0xf]
    %v1877 = vld [vmem:[%s7 + $0x5c] sm:$0xf]
    %v1878 = vld [vmem:[%s7 + $0x60] sm:$0xf]
    %v1879 = vld [vmem:[%s7 + $0x64] sm:$0xf]
    %v1880 = vld [vmem:[%s7 + $0x68] sm:$0xf]
    %v1881 = vld [vmem:[%s7 + $0x6c] sm:$0xf]
    %v1882 = vld [vmem:[%s7 + $0x70] sm:$0xf]
    %v1883 = vld [vmem:[%s7 + $0x74] sm:$0xf]
    %v1884 = vld [vmem:[%s7 + $0x78] sm:$0xf]
    %v1885 = vld [vmem:[%s7 + $0x7c] sm:$0xf]
    %v1886 = vld [vmem:[%s7 + $0x80] sm:$0xf]
    %v1887 = vld [vmem:[%s7 + $0x84] sm:$0xf]
    %v1888 = vld [vmem:[%s7 + $0x88] sm:$0xf]
    %v1889 = vld [vmem:[%s7 + $0x8c] sm:$0xf]
    %v1890 = vld [vmem:[%s7 + $0x90] sm:$0xf]
    %v1891 = vld [vmem:[%s7 + $0x94] sm:$0xf]
    %v1892 = vld [vmem:[%s7 + $0x98] sm:$0xf]
    %v1893 = vld [vmem:[%s7 + $0x9c] sm:$0xf]
    %v1894 = vld [vmem:[%s7 + $0xa0] sm:$0xf]
    %v1895 = vld [vmem:[%s7 + $0xa4] sm:$0xf]
    %v1896 = vld [vmem:[%s7 + $0xa8] sm:$0xf]
    %v1897 = vld [vmem:[%s7 + $0xac] sm:$0xf]
    %v1898 = vld [vmem:[%s7 + $0xb0] sm:$0xf]
    %v1899 = vld [vmem:[%s7 + $0xb4] sm:$0xf]
    %v1900 = vld [vmem:[%s7 + $0xb8] sm:$0xf]
    %v1901 = vld [vmem:[%s7 + $0xbc] sm:$0xf]
    %v1902 = vld [vmem:[%s7 + $0xc0] sm:$0xf]
    %v1903 = vld [vmem:[%s7 + $0xc4] sm:$0xf]
    %v1904 = vld [vmem:[%s7 + $0xc8] sm:$0xf]
    %v1905 = vld [vmem:[%s7 + $0xcc] sm:$0xf]
    %v1906 = vld [vmem:[%s7 + $0xd0] sm:$0xf]
    %v1907 = vld [vmem:[%s7 + $0xd4] sm:$0xf]
    %v1908 = vld [vmem:[%s7 + $0xd8] sm:$0xf]
    %v1909 = vld [vmem:[%s7 + $0xdc] sm:$0xf]
    %v1910 = vld [vmem:[%s7 + $0xe0] sm:$0xf]
    %v1911 = vld [vmem:[%s7 + $0xe4] sm:$0xf]
    %v1912 = vld [vmem:[%s7 + $0xe8] sm:$0xf]
    %v1913 = vld [vmem:[%s7 + $0xec] sm:$0xf]
    %v1914 = vld [vmem:[%s7 + $0xf0] sm:$0xf]
    %v1915 = vld [vmem:[%s7 + $0xf4] sm:$0xf]
    %v1916 = vld [vmem:[%s7 + $0xf8] sm:$0xf]
    %v1917 = vld [vmem:[%s7 + $0xfc] sm:$0xf]
    %v1918 = vld [vmem:[%s7 + $0x100] sm:$0xf]
    %v1919 = vld [vmem:[%s7 + $0x104] sm:$0xf]
    %v1920 = vld [vmem:[%s7 + $0x108] sm:$0xf]
    %v1921 = vld [vmem:[%s7 + $0x10c] sm:$0xf]
    %v1922 = vld [vmem:[%s7 + $0x110] sm:$0xf]
    %v1923 = vld [vmem:[%s7 + $0x114] sm:$0xf]
    %v1924 = vld [vmem:[%s7 + $0x118] sm:$0xf]
    %v1925 = vld [vmem:[%s7 + $0x11c] sm:$0xf]
    %v1926 = vld [vmem:[%s8] sm:$0x1]
    %v1928 = vlaneseq
    %v1929 = vshrl.u32 %v1928, 7
    %v1930 = vsub.s32 0, %v1929
    %v1931 = vrot.slane %v1926, %v1930
    %v1934 = vcombine.high %v1853, %v1853
    %v1936 = vunpack.c.l.s4 1966171168
    %v1937 = vunpack.c.0.s8 %v1936
    %v1938 = vlaneseq
    %v1939 = vshrl.u32 %v1938, 7
    %v1940 = vsub.s32 %v1937, %v1939
    %v1941 = vrot.slane %v1853, %v1940
    %v1943 = vunpack.c.l.s4 1966171168
    %v1944 = vunpack.c.0.s8 %v1943
    %v1945 = vlaneseq
    %v1946 = vshrl.u32 %v1945, 7
    %v1947 = vsub.s32 %v1944, %v1946
    %v1948 = vrot.slane %v1934, %v1947
    %v1949 = vcombine.high %v1941, %v1941
    %v1951 = vunpack.c.l.s4 1966171168
    %v1952 = vunpack.c.0.s8 %v1951
    %v1953 = vlaneseq
    %v1954 = vshrl.u32 %v1953, 7
    %v1955 = vsub.s32 %v1952, %v1954
    %v1956 = vrot.slane %v1941, %v1955
    %v1958 = vunpack.c.l.s4 1966171168
    %v1959 = vunpack.c.0.s8 %v1958
    %v1960 = vlaneseq
    %v1961 = vshrl.u32 %v1960, 7
    %v1962 = vsub.s32 %v1959, %v1961
    %v1963 = vrot.slane %v1948, %v1962
    %v1965 = vunpack.c.l.s4 1966171168
    %v1966 = vunpack.c.0.s8 %v1965
    %v1967 = vlaneseq
    %v1968 = vshrl.u32 %v1967, 7
    %v1969 = vsub.s32 %v1966, %v1968
    %v1970 = vrot.slane %v1949, %v1969
    %v1971 = vcombine.high %v1956, %v1956
    %v1972 = vcombine.high %v1970, %v1970
    %v2049 = vunpack.c.l.b16 %v1854
    %v2050 = vunpack.c.l.b16 %v1855
    %v2051 = vunpack.c.l.b16 %v1856
    %v2052 = vunpack.c.l.b16 %v1857
    %v2053 = vunpack.c.l.b16 %v1858
    %v2054 = vunpack.c.l.b16 %v1859
    %v2055 = vunpack.c.l.b16 %v1860
    %v2056 = vunpack.c.l.b16 %v1861
    %v2057 = vunpack.c.l.b16 %v1862
    %v2058 = vunpack.c.l.b16 %v1863
    %v2059 = vunpack.c.l.b16 %v1864
    %v2060 = vunpack.c.l.b16 %v1865
    %v2061 = vunpack.c.l.b16 %v1866
    %v2062 = vunpack.c.l.b16 %v1867
    %v2063 = vunpack.c.l.b16 %v1868
    %v2064 = vunpack.c.l.b16 %v1869
    %v2065 = vunpack.c.l.b16 %v1870
    %v2066 = vunpack.c.l.b16 %v1871
    %v2067 = vunpack.c.l.b16 %v1872
    %v2068 = vunpack.c.l.b16 %v1873
    %v2069 = vunpack.c.l.b16 %v1874
    %v2070 = vunpack.c.l.b16 %v1875
    %v2071 = vunpack.c.l.b16 %v1876
    %v2072 = vunpack.c.l.b16 %v1877
    %v2073 = vunpack.c.l.b16 %v1878
    %v2074 = vunpack.c.l.b16 %v1879
    %v2075 = vunpack.c.l.b16 %v1880
    %v2076 = vunpack.c.l.b16 %v1881
    %v2077 = vunpack.c.l.b16 %v1882
    %v2078 = vunpack.c.l.b16 %v1883
    %v2079 = vunpack.c.l.b16 %v1884
    %v2080 = vunpack.c.l.b16 %v1885
    %v2081 = vunpack.c.l.b16 %v1886
    %v2082 = vunpack.c.l.b16 %v1887
    %v2083 = vunpack.c.l.b16 %v1888
    %v2084 = vunpack.c.l.b16 %v1889
    %v2085 = vunpack.c.l.b16 %v1890
    %v2086 = vunpack.c.l.b16 %v1891
    %v2087 = vunpack.c.l.b16 %v1892
    %v2088 = vunpack.c.l.b16 %v1893
    %v2089 = vunpack.c.l.b16 %v1894
    %v2090 = vunpack.c.l.b16 %v1895
    %v2091 = vunpack.c.l.b16 %v1896
    %v2092 = vunpack.c.l.b16 %v1897
    %v2093 = vunpack.c.l.b16 %v1898
    %v2094 = vunpack.c.l.b16 %v1899
    %v2095 = vunpack.c.l.b16 %v1900
    %v2096 = vunpack.c.l.b16 %v1901
    %v2097 = vunpack.c.l.b16 %v1902
    %v2098 = vunpack.c.l.b16 %v1903
    %v2099 = vunpack.c.l.b16 %v1904
    %v2100 = vunpack.c.l.b16 %v1905
    %v2101 = vunpack.c.l.b16 %v1906
    %v2102 = vunpack.c.l.b16 %v1907
    %v2103 = vunpack.c.l.b16 %v1908
    %v2104 = vunpack.c.l.b16 %v1909
    %v2105 = vunpack.c.l.b16 %v1910
    %v2106 = vunpack.c.l.b16 %v1911
    %v2107 = vunpack.c.l.b16 %v1912
    %v2108 = vunpack.c.l.b16 %v1913
    %v2109 = vunpack.c.l.b16 %v1914
    %v2110 = vunpack.c.l.b16 %v1915
    %v2111 = vunpack.c.l.b16 %v1916
    %v2112 = vunpack.c.l.b16 %v1917
    %v2113 = vunpack.c.l.b16 %v1918
    %v2114 = vunpack.c.l.b16 %v1919
    %v2115 = vunpack.c.l.b16 %v1920
    %v2116 = vunpack.c.l.b16 %v1921
    %v2117 = vunpack.c.l.b16 %v1922
    %v2118 = vunpack.c.l.b16 %v1923
    %v2119 = vunpack.c.l.b16 %v1924
    %v2120 = vunpack.c.l.b16 %v1925
    %v2121 = vpack.c.b16 %v2050, %v2049
    %v2122 = vpack.c.b16 %v2052, %v2051
    %v2123 = vpack.c.b16 %v2054, %v2053
    %v2124 = vpack.c.b16 %v2056, %v2055
    %v2125 = vpack.c.b16 %v2058, %v2057
    %v2126 = vpack.c.b16 %v2060, %v2059
    %v2127 = vpack.c.b16 %v2062, %v2061
    %v2128 = vpack.c.b16 %v2064, %v2063
    %v2129 = vpack.c.b16 %v2066, %v2065
    %v2130 = vpack.c.b16 %v2068, %v2067
    %v2131 = vpack.c.b16 %v2070, %v2069
    %v2132 = vpack.c.b16 %v2072, %v2071
    %v2133 = vpack.c.b16 %v2074, %v2073
    %v2134 = vpack.c.b16 %v2076, %v2075
    %v2135 = vpack.c.b16 %v2078, %v2077
    %v2136 = vpack.c.b16 %v2080, %v2079
    %v2137 = vpack.c.b16 %v2082, %v2081
    %v2138 = vpack.c.b16 %v2084, %v2083
    %v2139 = vpack.c.b16 %v2086, %v2085
    %v2140 = vpack.c.b16 %v2088, %v2087
    %v2141 = vpack.c.b16 %v2090, %v2089
    %v2142 = vpack.c.b16 %v2092, %v2091
    %v2143 = vpack.c.b16 %v2094, %v2093
    %v2144 = vpack.c.b16 %v2096, %v2095
    %v2145 = vpack.c.b16 %v2098, %v2097
    %v2146 = vpack.c.b16 %v2100, %v2099
    %v2147 = vpack.c.b16 %v2102, %v2101
    %v2148 = vpack.c.b16 %v2104, %v2103
    %v2149 = vpack.c.b16 %v2106, %v2105
    %v2150 = vpack.c.b16 %v2108, %v2107
    %v2151 = vpack.c.b16 %v2110, %v2109
    %v2152 = vpack.c.b16 %v2112, %v2111
    %v2153 = vpack.c.b16 %v2114, %v2113
    %v2154 = vpack.c.b16 %v2116, %v2115
    %v2155 = vpack.c.b16 %v2118, %v2117
    %v2156 = vpack.c.b16 %v2120, %v2119
    %v2194 = vsel %vm1163, %v1963, 0
    %2196 = vmatprep.subr.bf16.mxu0 0
    %2197 = vmatpush1.bf16.msra.mxu0 %v2121
    %2198 = vmatprep.subr.bf16.mxu0 0
    %2199 = vmatpush1.bf16.msra.mxu0 %v2122
    %2200 = vmatprep.subr.bf16.mxu0 0
    %2201 = vmatpush1.bf16.msra.mxu0 %v2123
    %2202 = vmatprep.subr.bf16.mxu0 0
    %2203 = vmatpush1.bf16.msra.mxu0 %v2124
    %2204 = vmatprep.subr.bf16.mxu0 0
    %2205 = vmatpush1.bf16.msra.mxu0 %v2125
    %2206 = vmatprep.subr.bf16.mxu0 0
    %2207 = vmatpush1.bf16.msra.mxu0 %v2126
    %2208 = vmatprep.subr.bf16.mxu0 0
    %2209 = vmatpush1.bf16.msra.mxu0 %v2127
    %2210 = vmatprep.subr.bf16.mxu0 0
    %2211 = vmatpush1.bf16.msra.mxu0 %v2128
    %2212 = vmatprep.subr.bf16.mxu0 0
    %2213 = vmatpush1.bf16.msra.mxu0 %v2129
    %2214 = vmatprep.subr.bf16.mxu0 0
    %2215 = vmatpush1.bf16.msra.mxu0 %v2130
    %2216 = vmatprep.subr.bf16.mxu0 0
    %2217 = vmatpush1.bf16.msra.mxu0 %v2131
    %2218 = vmatprep.subr.bf16.mxu0 0
    %2219 = vmatpush1.bf16.msra.mxu0 %v2132
    %2220 = vmatprep.subr.bf16.mxu0 0
    %2221 = vmatpush1.bf16.msra.mxu0 %v2133
    %2222 = vmatprep.subr.bf16.mxu0 0
    %2223 = vmatpush1.bf16.msra.mxu0 %v2134
    %2224 = vmatprep.subr.bf16.mxu0 0
    %2225 = vmatpush1.bf16.msra.mxu0 %v2135
    %2226 = vmatprep.subr.bf16.mxu0 0
    %2227 = vmatpush1.bf16.msra.mxu0 %v2136
    %2228 = vmatprep.mubr.bf16.mxu0 %v1970
    %2229 = vmatmul.mubr.bf16.gmra.mrb[0].mxu0 %v1956
    %v2230 = vpop.f32.mrb[0].mxu0
    %v2231 = vadd.f32 %v1931, %v2230
    %v2232 = vpop.f32.mrb[0].mxu0
    %v2233 = vpop.f32.mrb[0].mxu0
    %v2234 = vpop.f32.mrb[0].mxu0
    %2235 = vdwg.mxu0
    %2236 = vmatprep.subr.bf16.mxu0 0
    %2237 = vmatpush1.bf16.msra.mxu0 %v2137
    %2238 = vmatprep.subr.bf16.mxu0 0
    %2239 = vmatpush1.bf16.msra.mxu0 %v2138
    %2240 = vmatprep.subr.bf16.mxu0 0
    %2241 = vmatpush1.bf16.msra.mxu0 %v2139
    %2242 = vmatprep.subr.bf16.mxu0 0
    %2243 = vmatpush1.bf16.msra.mxu0 %v2140
    %2244 = vmatprep.subr.bf16.mxu0 0
    %2245 = vmatpush1.bf16.msra.mxu0 %v2141
    %2246 = vmatprep.subr.bf16.mxu0 0
    %2247 = vmatpush1.bf16.msra.mxu0 %v2142
    %2248 = vmatprep.subr.bf16.mxu0 0
    %2249 = vmatpush1.bf16.msra.mxu0 %v2143
    %2250 = vmatprep.subr.bf16.mxu0 0
    %2251 = vmatpush1.bf16.msra.mxu0 %v2144
    %2252 = vmatprep.subr.bf16.mxu0 0
    %2253 = vmatpush1.bf16.msra.mxu0 %v2145
    %2254 = vmatprep.subr.bf16.mxu0 0
    %2255 = vmatpush1.bf16.msra.mxu0 %v2146
    %2256 = vmatprep.subr.bf16.mxu0 0
    %2257 = vmatpush1.bf16.msra.mxu0 %v2147
    %2258 = vmatprep.subr.bf16.mxu0 0
    %2259 = vmatpush1.bf16.msra.mxu0 %v2148
    %2260 = vmatprep.subr.bf16.mxu0 0
    %2261 = vmatpush1.bf16.msra.mxu0 %v2149
    %2262 = vmatprep.subr.bf16.mxu0 0
    %2263 = vmatpush1.bf16.msra.mxu0 %v2150
    %2264 = vmatprep.subr.bf16.mxu0 0
    %2265 = vmatpush1.bf16.msra.mxu0 %v2151
    %2266 = vmatprep.subr.bf16.mxu0 0
    %2267 = vmatpush1.bf16.msra.mxu0 %v2152
    %2268 = vmatprep.mubr.bf16.mxu0 %v1972
    %2269 = vmatmul.mubr.bf16.gmra.mrb[0].mxu0 %v1971
    %v2270 = vpop.f32.mrb[0].mxu0
    %v2271 = vadd.f32 %v2231, %v2270
    %v2272 = vpop.f32.mrb[0].mxu0
    %v2273 = vpop.f32.mrb[0].mxu0
    %v2274 = vpop.f32.mrb[0].mxu0
    %2275 = vdwg.mxu0
    %2276 = vmatprep.subr.bf16.mxu0 0
    %2277 = vmatpush1.bf16.msra.mxu0 %v2153
    %2278 = vmatprep.subr.bf16.mxu0 0
    %2279 = vmatpush1.bf16.msra.mxu0 %v2154
    %2280 = vmatprep.subr.bf16.mxu0 0
    %2281 = vmatpush1.bf16.msra.mxu0 %v2155
    %2282 = vmatprep.subr.bf16.mxu0 0
    %2283 = vmatpush1.bf16.msra.mxu0 %v2156
    %2284 = vmatprep.subr.bf16.mxu0 0
    %2285 = vmatpush1.bf16.msra.mxu0 0
    %2286 = vmatprep.subr.bf16.mxu0 0
    %2287 = vmatpush1.bf16.msra.mxu0 0
    %2288 = vmatprep.subr.bf16.mxu0 0
    %2289 = vmatpush1.bf16.msra.mxu0 0
    %2290 = vmatprep.subr.bf16.mxu0 0
    %2291 = vmatpush1.bf16.msra.mxu0 0
    %2292 = vmatprep.subr.bf16.mxu0 0
    %2293 = vmatpush1.bf16.msra.mxu0 0
    %2294 = vmatprep.subr.bf16.mxu0 0
    %2295 = vmatpush1.bf16.msra.mxu0 0
    %2296 = vmatprep.subr.bf16.mxu0 0
    %2297 = vmatpush1.bf16.msra.mxu0 0
    %2298 = vmatprep.subr.bf16.mxu0 0
    %2299 = vmatpush1.bf16.msra.mxu0 0
    %2300 = vmatprep.subr.bf16.mxu0 0
    %2301 = vmatpush1.bf16.msra.mxu0 0
    %2302 = vmatprep.subr.bf16.mxu0 0
    %2303 = vmatpush1.bf16.msra.mxu0 0
    %2304 = vmatprep.subr.bf16.mxu0 0
    %2305 = vmatpush1.bf16.msra.mxu0 0
    %2306 = vmatprep.subr.bf16.mxu0 0
    %2307 = vmatpush1.bf16.msra.mxu0 0
    %2308 = vmatprep.mubr.bf16.mxu0 0
    %2309 = vmatmul.mubr.bf16.gmra.mrb[0].mxu0 %v2194
    %v2310 = vpop.f32.mrb[0].mxu0
    %v2311 = vadd.f32 %v2271, %v2310
    %v2312 = vpop.f32.mrb[0].mxu0
    %v2313 = vpop.f32.mrb[0].mxu0
    %v2314 = vpop.f32.mrb[0].mxu0
    %2315 = vdwg.mxu0
    %v2316 = vmax.f32 %v2311, 0.0
    %v2317 = vld [vmem:[%s9] sm:$0xff]
    %v2318 = vld [vmem:[%s9 + $0x8] sm:$0xff]
    %v2319 = vld [vmem:[%s10] sm:$0x1]
    %v2321 = vlaneseq
    %v2322 = vshrl.u32 %v2321, 7
    %v2323 = vsub.s32 0, %v2322
    %v2324 = vrot.slane %v2319, %v2323
    %vm2326 = vcmask 130048
    %v2328 = vsel %vm2326, %v2316, 0
    %2330 = vmatprep.subr.mxu0 0.0
    %2331 = vmatpush1.msra.mxu0 %v2317
    %2332 = vmatprep.subr.mxu0 0.0
    %2333 = vmatpush1.msra.mxu0 %v2318
    %2334 = vmatprep.subr.mxu0 0.0
    %2335 = vmatpush1.msra.mxu0 0.0
    %2336 = vmatprep.subr.mxu0 0.0
    %2337 = vmatpush1.msra.mxu0 0.0
    %2338 = vmatprep.subr.mxu0 0.0
    %2339 = vmatpush1.msra.mxu0 0.0
    %2340 = vmatprep.subr.mxu0 0.0
    %2341 = vmatpush1.msra.mxu0 0.0
    %2342 = vmatprep.subr.mxu0 0.0
    %2343 = vmatpush1.msra.mxu0 0.0
    %2344 = vmatprep.subr.mxu0 0.0
    %2345 = vmatpush1.msra.mxu0 0.0
    %2346 = vmatprep.subr.mxu0 0.0
    %2347 = vmatpush1.msra.mxu0 0.0
    %2348 = vmatprep.subr.mxu0 0.0
    %2349 = vmatpush1.msra.mxu0 0.0
    %2350 = vmatprep.subr.mxu0 0.0
    %2351 = vmatpush1.msra.mxu0 0.0
    %2352 = vmatprep.subr.mxu0 0.0
    %2353 = vmatpush1.msra.mxu0 0.0
    %2354 = vmatprep.subr.mxu0 0.0
    %2355 = vmatpush1.msra.mxu0 0.0
    %2356 = vmatprep.subr.mxu0 0.0
    %2357 = vmatpush1.msra.mxu0 0.0
    %2358 = vmatprep.subr.mxu0 0.0
    %2359 = vmatpush1.msra.mxu0 0.0
    %2360 = vmatprep.subr.mxu0 0.0
    %2361 = vmatpush1.msra.mxu0 0.0
    %2362 = vmatprep.subr.mxu0 0.0
    %2363 = vmatpush1.msra.mxu0 0.0
    %2364 = vmatprep.subr.mxu0 0.0
    %2365 = vmatpush1.msra.mxu0 0.0
    %2366 = vmatprep.subr.mxu0 0.0
    %2367 = vmatpush1.msra.mxu0 0.0
    %2368 = vmatprep.subr.mxu0 0.0
    %2369 = vmatpush1.msra.mxu0 0.0
    %2370 = vmatprep.subr.mxu0 0.0
    %2371 = vmatpush1.msra.mxu0 0.0
    %2372 = vmatprep.subr.mxu0 0.0
    %2373 = vmatpush1.msra.mxu0 0.0
    %2374 = vmatprep.subr.mxu0 0.0
    %2375 = vmatpush1.msra.mxu0 0.0
    %2376 = vmatprep.subr.mxu0 0.0
    %2377 = vmatpush1.msra.mxu0 0.0
    %2378 = vmatprep.subr.mxu0 0.0
    %2379 = vmatpush1.msra.mxu0 0.0
    %2380 = vmatprep.subr.mxu0 0.0
    %2381 = vmatpush1.msra.mxu0 0.0
    %2382 = vmatprep.subr.mxu0 0.0
    %2383 = vmatpush1.msra.mxu0 0.0
    %2384 = vmatprep.subr.mxu0 0.0
    %2385 = vmatpush1.msra.mxu0 0.0
    %2386 = vmatprep.subr.mxu0 0.0
    %2387 = vmatpush1.msra.mxu0 0.0
    %2388 = vmatprep.subr.mxu0 0.0
    %2389 = vmatpush1.msra.mxu0 0.0
    %2390 = vmatprep.subr.mxu0 0.0
    %2391 = vmatpush1.msra.mxu0 0.0
    %2392 = vmatprep.subr.mxu0 0.0
    %2393 = vmatpush1.msra.mxu0 0.0
    %2394 = vmatprep.mubr.f32.mxu0 0.0
    %2395 = vmatmul.mubr.f32.gmra.mrb[0].mxu0 %v2328
    %v2396 = vpop.f32.mrb[0].mxu0
    %v2397 = vadd.f32 %v2324, %v2396
    %v2398 = vpop.f32.mrb[0].mxu0
    %2399 = vdwg.mxu0
    %vm2400 = vcmask 9216
    %2401 = vst.msk [vmem:[#allocation6] sm:$0x3] %vm2400, %v2397
    // Predicated region
    $region46: #{road_detector_forward.1} parent=1 // pred_check
      _
    $region47: #{road_detector_forward.1} parent=1 // pred_check_branch
      %2403 = sbr.rel (0) target = $region49
    $region48: #{road_detector_forward.1} parent=1 // pred_region
      %s2405 = ssub.s32 32, 32
      %2406 = vsyncadd [#allocation7], %s2405
      %s2408 = sshll.u32 [#allocation6], 4
      %s2409 = int_to_ptr.vmem [resolvable:$true] %s2408
      %2411 = dma.vmem_to_hbm [thread:$0]  %s2409, 32, %s11, [#allocation7]
    $region49: #{road_detector_forward.1} parent=1 // pred_fallthru
      _
    // Predicated region
    $region50: #{road_detector_forward.1} parent=1 // pred_check
      _
    $region51: #{road_detector_forward.1} parent=1 // pred_check_branch
      %2413 = sbr.rel (0) target = $region53
    $region52: #{road_detector_forward.1} parent=1 // pred_region
      %2414 = dma.done [#allocation7], 32
    $region53: #{road_detector_forward.1} parent=1 // pred_fallthru
      _
    %2415 = vsyncpa [#allocation7], 1

</llo_original>
